<compile_context>
chip_gen: v7x
topology: tpu7x:2x2x1
jax: 0.10.0
libtpu: 0.0.40
codegen_flags: <defaults>
</compile_context>

<pallas_src>
import functools

import jax
import jax.numpy as jnp
from jax.experimental import pallas as pl
from jax.experimental.pallas import tpu as pltpu

_LANE = 128


def _round_up(x, m):
    return (x + m - 1) // m * m


def _vmem_limit_bytes():
    """Scoped-VMEM limit: ~3/4 of per-core physical VMEM, conservatively capped."""
    cap = 64 << 20                      # conservative default: v7x has 64 MiB / TC
    try:
        info_cap = int(pltpu.get_tpu_info().vmem_capacity_bytes)
        if (32 << 20) <= info_cap <= (256 << 20):
            cap = info_cap
    except Exception:
        pass
    return min(cap * 3 // 4, 96 << 20)   # v7x -> 48 MiB, v5e/v6e -> 96 MiB


def _pick_batch_tile(Bp, Tp, Lp, KVP, NPAD, CPAD, budget):
    """Largest batch tile (multiple of 8, dividing Bp) whose per-tile VMEM fits.

    Accounts for lane padding and every in-kernel intermediate; prefers an
    even >=2-step grid so the 'parallel' axis shards across v7x's two cores.
    """
    per_row = (
        2 * _round_up(Lp, _LANE) * 4     # int32 token tile, lane-padded, double-buffered
        + Tp * KVP * 2                   # bf16 one-hot im2col
        + 2 * Tp * NPAD * 4              # f32 conv outputs (+ masked copy)
        + 2 * NPAD * 4                   # pooled + feat (f32)
        + 2 * CPAD * 4                   # f32 logits tile, double-buffered
    )
    cands = [t for t in range(8, Bp + 1, 8) if Bp % t == 0] or [Bp]

    def pick(group):
        fits = [t for t in group if t * per_row <= budget]
        return max(fits) if fits else None

    if Bp >= 16:
        even = [t for t in cands if (Bp // t) >= 2 and (Bp // t) % 2 == 0]
        multi = [t for t in cands if (Bp // t) >= 2]
        for group in (even, multi, cands):
            t = pick(group)
            if t is not None:
                return t
        return min(cands)
    t = pick(cands)
    return t if t is not None else min(cands)


def _wordcnn_kernel(V, Kmax, tok_ref, wf_ref, tmask_ref, cbias_ref,
                    fcw_ref, fcb_ref, out_ref):
    """One batch tile: one-hot im2col -> fused gather+conv matmul -> masked
    time-max -> deferred bias/ReLU -> lane-dense FC."""
    tB = tok_ref.shape[0]
    KVP, NPAD = wf_ref.shape
    Tp = tmask_ref.shape[0]

    tok = tok_ref[...]                                            # (tB, Lp) int32

    # (1) Build the im2col one-hot of the token window directly in VMEM.
    #     Lane l of tap k encodes "token at position t+k equals l - k*V"; the
    #     supports of different taps are disjoint (token ids < V), so a plain
    #     accumulate gives the stacked one-hot.  This *is* the embedding
    #     gather, expressed as an exact 0/1 MXU operand -- no (B, L, D) tensor.
    lane_iota = jax.lax.broadcasted_iota(jnp.int32, (tB, Tp, KVP), 2)
    onehot = jnp.zeros((tB, Tp, KVP), jnp.bfloat16)
    for k in range(Kmax):
        tk = tok[:, k:k + Tp] + k * V                             # (tB, Tp) int32
        onehot = onehot + (tk[:, :, None] == lane_iota).astype(jnp.bfloat16)

    # (2) Single deep, lane-dense MXU matmul: embedding gather + every tap of
    #     every conv kernel size at once (weights hold E @ w_K[k] per tap).
    r = jnp.dot(onehot.reshape(tB * Tp, KVP), wf_ref[...],
                preferred_element_type=jnp.float32)               # (tB*Tp, NPAD) f32
    r = r.reshape(tB, Tp, NPAD)

    # (3) Masked full-width max-pool over time (mask kills positions where a
    #     kernel size runs off the sequence end), then deferred bias + ReLU.
    pooled = jnp.max(r + tmask_ref[...][None], axis=1)            # (tB, NPAD) f32
    feat = jnp.maximum(pooled + cbias_ref[...], 0.0)
    # TODO(synk): nn.Dropout in train mode (random masking) is treated as eval-mode identity.

    # (4) Lane-dense FC: (tB, 128) @ (128, 128) -> unmasked full-vreg store;
    #     the wrapper slices logits back to C.
    logits = jnp.dot(feat.astype(fcw_ref.dtype), fcw_ref[...],
                     preferred_element_type=jnp.float32) + fcb_ref[...]
    out_ref[...] = logits.astype(out_ref.dtype)


def wordcnn_forward(tokens, embed_table, conv_ws, conv_bs, fc_w, fc_b, Ks):
    """Full WordCNN forward (embedding + convs + max-pool + FC) in one kernel."""
    Ks = tuple(int(k) for k in Ks)
    B, L = tokens.shape
    V, D = embed_table.shape
    Co = conv_ws[0].shape[2]
    C = fc_w.shape[1]
    Kmax, Kmin = max(Ks), min(Ks)

    T = L - Kmin + 1                      # widest valid conv length
    Tp = _round_up(T, 16)                 # sublane-tile aligned (bf16: 16, f32: 8)
    Lp = Tp + Kmax - 1                    # token length needed by every tap
    KV = Kmax * V
    KVP = _round_up(max(KV, _LANE), _LANE)
    Nfeat = len(Ks) * Co
    NPAD = _round_up(max(Nfeat, _LANE), _LANE)
    CPAD = _round_up(max(C, _LANE), _LANE)

    # --- weight folding (wrapper-side, once): fused gather+conv weight ------
    # TODO(synk): for large vocabularies the one-hot contraction (Kmax*V) does
    # not scale; switch to an HBM-resident table + in-kernel DMA row-gather.
    E = embed_table.astype(jnp.float32)
    row_blocks = []
    for k in range(Kmax):
        cols = []
        for K, w in zip(Ks, conv_ws):
            if k < K:
                cols.append(E @ w[k].astype(jnp.float32))          # (V, Co)
            else:
                cols.append(jnp.zeros((V, Co), jnp.float32))
        row_blocks.append(jnp.concatenate(cols, axis=1))           # (V, Nfeat)
    wf = jnp.concatenate(row_blocks, axis=0)                       # (KV, Nfeat)
    wf = jnp.pad(wf, ((0, KVP - KV), (0, NPAD - Nfeat))).astype(jnp.bfloat16)

    cbias = jnp.concatenate([b.reshape(1, Co) for b in conv_bs], axis=1)
    cbias = jnp.pad(cbias, ((0, 0), (0, NPAD - Nfeat))).astype(jnp.float32)

    # time-validity mask: 0 where position t is valid for that column's kernel
    # size (and for all padding columns), -1e30 otherwise.
    vlen = jnp.concatenate(
        [jnp.full((Co,), L - K + 1, jnp.int32) for K in Ks]
        + [jnp.full((NPAD - Nfeat,), Tp, jnp.int32)], axis=0)      # (NPAD,)
    tmask = jnp.where(jnp.arange(Tp)[:, None] < vlen[None, :],
                      0.0, -1e30).astype(jnp.float32)              # (Tp, NPAD)

    fcw = jnp.pad(fc_w, ((0, NPAD - Nfeat), (0, CPAD - C))).astype(jnp.bfloat16)
    fcb = jnp.pad(fc_b.reshape(1, C), ((0, 0), (0, CPAD - C))).astype(jnp.float32)

    # --- batch padding + tile: even >=2-step 'parallel' grid when possible ---
    Bp = _round_up(B, 16) if B > 8 else B
    tok_p = jnp.pad(tokens.astype(jnp.int32), ((0, Bp - B), (0, Lp - L)))

    vmem_limit = _vmem_limit_bytes()
    weight_bytes = 2 * (KVP * NPAD * 2 + Tp * NPAD * 4 + NPAD * 4
                        + NPAD * CPAD * 2 + CPAD * 4)              # double-buffered
    budget = max(vmem_limit // 2 - weight_bytes, 1 << 20)
    tB = _pick_batch_tile(Bp, Tp, Lp, KVP, NPAD, CPAD, budget)
    grid = (Bp // tB,)

    kernel = functools.partial(_wordcnn_kernel, V, Kmax)

    out = pl.pallas_call(
        kernel,
        out_shape=jax.ShapeDtypeStruct((Bp, CPAD), jnp.float32),
        grid=grid,
        in_specs=[
            pl.BlockSpec((tB, Lp), lambda b: (b, 0)),      # token ids (tiled over batch)
            pl.BlockSpec((KVP, NPAD), lambda b: (0, 0)),   # fused embed*conv weight
            pl.BlockSpec((Tp, NPAD), lambda b: (0, 0)),    # time-validity mask
            pl.BlockSpec((1, NPAD), lambda b: (0, 0)),     # packed conv bias
            pl.BlockSpec((NPAD, CPAD), lambda b: (0, 0)),  # padded fc weight
            pl.BlockSpec((1, CPAD), lambda b: (0, 0)),     # padded fc bias
        ],
        out_specs=pl.BlockSpec((tB, CPAD), lambda b: (b, 0)),
        compiler_params=pltpu.CompilerParams(
            dimension_semantics=("parallel",),
            vmem_limit_bytes=vmem_limit),
    )(tok_p, wf, tmask, cbias, fcw, fcb)

    return out[:B, :C]


def wordcnn_reference(tokens, embed_table, conv_ws, conv_bs, fc_w, fc_b, Ks):
    """Pure-JAX f32 reference reproducing the PyTorch forward."""
    emb = jnp.take(embed_table, tokens, axis=0).astype(jnp.float32)    # (B, L, D)
    B, L, _ = emb.shape
    feats = []
    for (K, w, b) in zip(Ks, conv_ws, conv_bs):
        T = L - K + 1
        acc = jnp.zeros((B, T, w.shape[2]), jnp.float32)
        for k in range(K):
            acc += jnp.einsum("bld,dc->blc", emb[:, k:k + T, :], w[k])
        acc = jax.nn.relu(acc + b[0][None, None, :])
        feats.append(jnp.max(acc, axis=1))
    feat = jnp.concatenate(feats, axis=1)
    return feat @ fc_w + fc_b


if __name__ == "__main__":
    # Small config consistent with the module:
    #   vocab_size=19 -> V=20, embed_dim D=32, kernel_num Co=8,
    #   kernel_sizes "3,4,5", class_num C=4, batch B=16, seq_len L=16.
    V, D, Co, C = 20, 32, 8, 4
    Ks = [3, 4, 5]
    B, L = 16, 16

    key = jax.random.PRNGKey(0)
    keys = jax.random.split(key, 4 + 2 * len(Ks))

    tokens = jax.random.randint(keys[0], (B, L), 0, V, dtype=jnp.int32)
    embed_table = jax.random.normal(keys[1], (V, D), jnp.float32) * 0.1

    conv_ws, conv_bs = [], []
    for i, K in enumerate(Ks):
        conv_ws.append(
            jax.random.normal(keys[2 + 2 * i], (K, D, Co), jnp.float32) * 0.1)
        conv_bs.append(
            jax.random.normal(keys[3 + 2 * i], (1, Co), jnp.float32) * 0.1)

    fc_w = jax.random.normal(keys[-2], (len(Ks) * Co, C), jnp.float32) * 0.1
    fc_b = jax.random.normal(keys[-1], (1, C), jnp.float32) * 0.1

    logits = wordcnn_forward(tokens, embed_table, conv_ws, conv_bs,
                             fc_w, fc_b, Ks)
    logits = jax.block_until_ready(logits)

    ref = wordcnn_reference(tokens, embed_table, conv_ws, conv_bs,
                            fc_w, fc_b, Ks)
    assert logits.shape == (B, C)
    # bf16 MXU operands (f32 accumulation) -> looser tolerance than pure f32;
    # near-tied logits may flip class vs the f32 reference (inference-OK).
    assert jnp.allclose(logits, ref, atol=2e-2, rtol=2e-2), (logits, ref)

    print("KERNEL_OK")
</pallas_src>

<mosaic_0001>
module attributes {stable_mosaic.version = 11 : i64} {
  func.func @_wordcnn_kernel(%arg0: i32, %arg1: memref<8x20xi32, #tpu.memory_space<vmem>>, %arg2: memref<128x128xbf16, #tpu.memory_space<vmem>>, %arg3: memref<16x128xf32, #tpu.memory_space<vmem>>, %arg4: memref<1x128xf32, #tpu.memory_space<vmem>>, %arg5: memref<128x128xbf16, #tpu.memory_space<vmem>>, %arg6: memref<1x128xf32, #tpu.memory_space<vmem>>, %arg7: memref<8x128xf32, #tpu.memory_space<vmem>>) attributes {dimension_semantics = [#tpu.dimension_semantics<parallel>], iteration_bounds = array<i64: 2>, scalar_prefetch = 0 : i64, scratch_operands = 0 : i64, tpu.core_type = #tpu.core_type<tc>, window_params = [{transform_indices = @transform_0, window_bounds = array<i64: 8, 20>}, {pipeline_mode = #tpu.pipeline_mode<synchronous>, transform_indices = @transform_1, window_bounds = array<i64: 128, 128>}, {pipeline_mode = #tpu.pipeline_mode<synchronous>, transform_indices = @transform_2, window_bounds = array<i64: 16, 128>}, {pipeline_mode = #tpu.pipeline_mode<synchronous>, transform_indices = @transform_3, window_bounds = array<i64: 1, 128>}, {pipeline_mode = #tpu.pipeline_mode<synchronous>, transform_indices = @transform_4, window_bounds = array<i64: 128, 128>}, {pipeline_mode = #tpu.pipeline_mode<synchronous>, transform_indices = @transform_5, window_bounds = array<i64: 1, 128>}, {transform_indices = @transform_6, window_bounds = array<i64: 8, 128>}]} {
    %c0 = arith.constant 0 : index
    %c0_0 = arith.constant 0 : index
    %0 = vector.load %arg1[%c0, %c0_0] : memref<8x20xi32, #tpu.memory_space<vmem>>, vector<8x20xi32>
    %1 = tpu.iota {dimensions = array<i32: 2>} : vector<8x16x128xi32>
    %cst = arith.constant 0.000000e+00 : bf16
    %2 = vector.broadcast %cst : bf16 to vector<8x16x128xbf16>
    %3 = vector.extract_strided_slice %0 {offsets = [0, 0], sizes = [8, 16], strides = [1, 1]} : vector<8x20xi32> to vector<8x16xi32>
    %c0_i32 = arith.constant 0 : i32
    %4 = vector.broadcast %c0_i32 : i32 to vector<8x16xi32>
    %5 = arith.addi %3, %4 : vector<8x16xi32>
    %6 = vector.shape_cast %5 : vector<8x16xi32> to vector<8x16x1xi32>
    %7 = vector.broadcast %6 : vector<8x16x1xi32> to vector<8x16x128xi32>
    %8 = arith.cmpi eq, %7, %1 : vector<8x16x128xi32>
    %9 = arith.extui %8 : vector<8x16x128xi1> to vector<8x16x128xi32>
    %10 = arith.sitofp %9 : vector<8x16x128xi32> to vector<8x16x128xf32>
    %11 = arith.truncf %10 : vector<8x16x128xf32> to vector<8x16x128xbf16>
    %12 = arith.addf %2, %11 : vector<8x16x128xbf16>
    %13 = vector.extract_strided_slice %0 {offsets = [0, 1], sizes = [8, 16], strides = [1, 1]} : vector<8x20xi32> to vector<8x16xi32>
    %c20_i32 = arith.constant 20 : i32
    %14 = vector.broadcast %c20_i32 : i32 to vector<8x16xi32>
    %15 = arith.addi %13, %14 : vector<8x16xi32>
    %16 = vector.shape_cast %15 : vector<8x16xi32> to vector<8x16x1xi32>
    %17 = vector.broadcast %16 : vector<8x16x1xi32> to vector<8x16x128xi32>
    %18 = arith.cmpi eq, %17, %1 : vector<8x16x128xi32>
    %19 = arith.extui %18 : vector<8x16x128xi1> to vector<8x16x128xi32>
    %20 = arith.sitofp %19 : vector<8x16x128xi32> to vector<8x16x128xf32>
    %21 = arith.truncf %20 : vector<8x16x128xf32> to vector<8x16x128xbf16>
    %22 = arith.addf %12, %21 : vector<8x16x128xbf16>
    %23 = vector.extract_strided_slice %0 {offsets = [0, 2], sizes = [8, 16], strides = [1, 1]} : vector<8x20xi32> to vector<8x16xi32>
    %c40_i32 = arith.constant 40 : i32
    %24 = vector.broadcast %c40_i32 : i32 to vector<8x16xi32>
    %25 = arith.addi %23, %24 : vector<8x16xi32>
    %26 = vector.shape_cast %25 : vector<8x16xi32> to vector<8x16x1xi32>
    %27 = vector.broadcast %26 : vector<8x16x1xi32> to vector<8x16x128xi32>
    %28 = arith.cmpi eq, %27, %1 : vector<8x16x128xi32>
    %29 = arith.extui %28 : vector<8x16x128xi1> to vector<8x16x128xi32>
    %30 = arith.sitofp %29 : vector<8x16x128xi32> to vector<8x16x128xf32>
    %31 = arith.truncf %30 : vector<8x16x128xf32> to vector<8x16x128xbf16>
    %32 = arith.addf %22, %31 : vector<8x16x128xbf16>
    %33 = vector.extract_strided_slice %0 {offsets = [0, 3], sizes = [8, 16], strides = [1, 1]} : vector<8x20xi32> to vector<8x16xi32>
    %c60_i32 = arith.constant 60 : i32
    %34 = vector.broadcast %c60_i32 : i32 to vector<8x16xi32>
    %35 = arith.addi %33, %34 : vector<8x16xi32>
    %36 = vector.shape_cast %35 : vector<8x16xi32> to vector<8x16x1xi32>
    %37 = vector.broadcast %36 : vector<8x16x1xi32> to vector<8x16x128xi32>
    %38 = arith.cmpi eq, %37, %1 : vector<8x16x128xi32>
    %39 = arith.extui %38 : vector<8x16x128xi1> to vector<8x16x128xi32>
    %40 = arith.sitofp %39 : vector<8x16x128xi32> to vector<8x16x128xf32>
    %41 = arith.truncf %40 : vector<8x16x128xf32> to vector<8x16x128xbf16>
    %42 = arith.addf %32, %41 : vector<8x16x128xbf16>
    %43 = vector.extract_strided_slice %0 {offsets = [0, 4], sizes = [8, 16], strides = [1, 1]} : vector<8x20xi32> to vector<8x16xi32>
    %c80_i32 = arith.constant 80 : i32
    %44 = vector.broadcast %c80_i32 : i32 to vector<8x16xi32>
    %45 = arith.addi %43, %44 : vector<8x16xi32>
    %46 = vector.shape_cast %45 : vector<8x16xi32> to vector<8x16x1xi32>
    %47 = vector.broadcast %46 : vector<8x16x1xi32> to vector<8x16x128xi32>
    %48 = arith.cmpi eq, %47, %1 : vector<8x16x128xi32>
    %49 = arith.extui %48 : vector<8x16x128xi1> to vector<8x16x128xi32>
    %50 = arith.sitofp %49 : vector<8x16x128xi32> to vector<8x16x128xf32>
    %51 = arith.truncf %50 : vector<8x16x128xf32> to vector<8x16x128xbf16>
    %52 = arith.addf %42, %51 : vector<8x16x128xbf16>
    %53 = vector.shape_cast %52 : vector<8x16x128xbf16> to vector<128x128xbf16>
    %c0_1 = arith.constant 0 : index
    %c0_2 = arith.constant 0 : index
    %54 = vector.load %arg2[%c0_1, %c0_2] : memref<128x128xbf16, #tpu.memory_space<vmem>>, vector<128x128xbf16>
    %cst_3 = arith.constant dense<0.000000e+00> : vector<128x128xf32>
    %55 = tpu.matmul %53, %54, %cst_3 {dimension_numbers = #tpu.dot_dimension_numbers<[1], [0], [0], [1], [0, 0, 1, 1], [], []>} : vector<128x128xbf16>, vector<128x128xbf16>, vector<128x128xf32> -> vector<128x128xf32>
    %56 = vector.shape_cast %55 : vector<128x128xf32> to vector<8x16x128xf32>
    %c0_4 = arith.constant 0 : index
    %c0_5 = arith.constant 0 : index
    %57 = vector.load %arg3[%c0_4, %c0_5] : memref<16x128xf32, #tpu.memory_space<vmem>>, vector<16x128xf32>
    %58 = vector.shape_cast %57 : vector<16x128xf32> to vector<1x16x128xf32>
    %59 = vector.broadcast %58 : vector<1x16x128xf32> to vector<8x16x128xf32>
    %60 = arith.addf %56, %59 : vector<8x16x128xf32>
    %cst_6 = arith.constant dense<0xFF800000> : vector<8x128xf32>
    %61 = vector.multi_reduction <maximumf>, %60, %cst_6 [1] : vector<8x16x128xf32> to vector<8x128xf32>
    %c0_7 = arith.constant 0 : index
    %c0_8 = arith.constant 0 : index
    %62 = vector.load %arg4[%c0_7, %c0_8] : memref<1x128xf32, #tpu.memory_space<vmem>>, vector<1x128xf32>
    %63 = vector.broadcast %62 : vector<1x128xf32> to vector<8x128xf32>
    %64 = arith.addf %61, %63 : vector<8x128xf32>
    %cst_9 = arith.constant 0.000000e+00 : f32
    %65 = vector.broadcast %cst_9 : f32 to vector<8x128xf32>
    %66 = arith.maximumf %64, %65 : vector<8x128xf32>
    %67 = arith.truncf %66 : vector<8x128xf32> to vector<8x128xbf16>
    %c0_10 = arith.constant 0 : index
    %c0_11 = arith.constant 0 : index
    %68 = vector.load %arg5[%c0_10, %c0_11] : memref<128x128xbf16, #tpu.memory_space<vmem>>, vector<128x128xbf16>
    %cst_12 = arith.constant dense<0.000000e+00> : vector<8x128xf32>
    %69 = tpu.matmul %67, %68, %cst_12 {dimension_numbers = #tpu.dot_dimension_numbers<[1], [0], [0], [1], [0, 0, 1, 1], [], []>} : vector<8x128xbf16>, vector<128x128xbf16>, vector<8x128xf32> -> vector<8x128xf32>
    %c0_13 = arith.constant 0 : index
    %c0_14 = arith.constant 0 : index
    %70 = vector.load %arg6[%c0_13, %c0_14] : memref<1x128xf32, #tpu.memory_space<vmem>>, vector<1x128xf32>
    %71 = vector.broadcast %70 : vector<1x128xf32> to vector<8x128xf32>
    %72 = arith.addf %69, %71 : vector<8x128xf32>
    %c0_15 = arith.constant 0 : index
    %c0_16 = arith.constant 0 : index
    %73 = vector.load %arg7[%c0_15, %c0_16] : memref<8x128xf32, #tpu.memory_space<vmem>>, vector<8x128xf32>
    tpu.vector_store %arg7[%c0_15, %c0_16], %72 {strides = array<i32>} : memref<8x128xf32, #tpu.memory_space<vmem>>, vector<8x128xf32>,
    return
  }
  func.func @transform_0(%arg0: i32) -> (i32, i32) {
    %c0_i32 = arith.constant 0 : i32
    %c0_i32_0 = arith.constant 0 : i32
    return %arg0, %c0_i32 : i32, i32
  }
  func.func @transform_1(%arg0: i32) -> (i32, i32) {
    %c0_i32 = arith.constant 0 : i32
    %c0_i32_0 = arith.constant 0 : i32
    %c0_i32_1 = arith.constant 0 : i32
    return %c0_i32, %c0_i32_0 : i32, i32
  }
  func.func @transform_2(%arg0: i32) -> (i32, i32) {
    %c0_i32 = arith.constant 0 : i32
    %c0_i32_0 = arith.constant 0 : i32
    %c0_i32_1 = arith.constant 0 : i32
    return %c0_i32, %c0_i32_0 : i32, i32
  }
  func.func @transform_3(%arg0: i32) -> (i32, i32) {
    %c0_i32 = arith.constant 0 : i32
    %c0_i32_0 = arith.constant 0 : i32
    %c0_i32_1 = arith.constant 0 : i32
    return %c0_i32, %c0_i32_0 : i32, i32
  }
  func.func @transform_4(%arg0: i32) -> (i32, i32) {
    %c0_i32 = arith.constant 0 : i32
    %c0_i32_0 = arith.constant 0 : i32
    %c0_i32_1 = arith.constant 0 : i32
    return %c0_i32, %c0_i32_0 : i32, i32
  }
  func.func @transform_5(%arg0: i32) -> (i32, i32) {
    %c0_i32 = arith.constant 0 : i32
    %c0_i32_0 = arith.constant 0 : i32
    %c0_i32_1 = arith.constant 0 : i32
    return %c0_i32, %c0_i32_0 : i32, i32
  }
  func.func @transform_6(%arg0: i32) -> (i32, i32) {
    %c0_i32 = arith.constant 0 : i32
    %c0_i32_0 = arith.constant 0 : i32
    return %arg0, %c0_i32 : i32, i32
  }
}

</mosaic_0001>

<llo_original>
// kernel: tpu_custom_call.1
$region0: #{tpu_custom_call.1}
  #allocation0 [shape = 'u32[]', space=smem, size = 0x4, offset = 0x4, fixed_abs, tag = 'smem constant byte address 0x4 - core index']
  #allocation1 [shape = 'u32[144,128]{1,0:T(1,128)}', space=vmem, size = 0x12000, scoped, tag = 'internal scratch']
  %s0 = inlined_call_operand.hbm [shape: s32[16,20], index: 0, kind: input, shape index: {}]
  %s1 = inlined_call_operand.hbm [shape: bf16[128,128], index: 1, kind: input, shape index: {}]
  %s2 = inlined_call_operand.hbm [shape: f32[16,128], index: 2, kind: input, shape index: {}]
  %s3 = inlined_call_operand.vmem [shape: f32[1,128], index: 3, kind: input, shape index: {}]
  %s4 = inlined_call_operand.hbm [shape: bf16[128,128], index: 4, kind: input, shape index: {}]
  %s5 = inlined_call_operand.vmem [shape: f32[1,128], index: 5, kind: input, shape index: {}]
  %s6 = inlined_call_operand.hbm [shape: f32[16,128], index: 6, kind: output, shape index: {}]
  %s7 = sld [smem:[#allocation0]]
  $region73: #{tpu_custom_call.1} parent=0
    _
  %s9 = ssub.s32 1, %s7
  %s10 = scalar_select 0, %s9, %s7
  $region1: #{tpu_custom_call.1} parent=0
    #allocation2 [shape = 'u8[8192]{0}', space=vmem, size = 0x2000, scoped, tag = 'input window, operand 0']
    #allocation3 [shape = 's32[2]{0}', space=sflag, size = 0x8, scoped, tag = 'scoped memory for tpu_custom_call.1']
    #allocation4 [shape = 's32[2]{0}', space=sflag, size = 0x8, scoped, tag = 'scoped memory for tpu_custom_call.1']
    #allocation5 [shape = 'u8[32768]{0}', space=vmem, size = 0x8000, scoped, tag = 'input window, operand 1, single buffered']
    #allocation6 [shape = 's32[1]{0}', space=sflag, size = 0x4, scoped, tag = 'scoped memory for tpu_custom_call.1']
    #allocation7 [shape = 'u8[8192]{0}', space=vmem, size = 0x2000, scoped, tag = 'input window, operand 2, single buffered']
    #allocation8 [shape = 'u8[32768]{0}', space=vmem, size = 0x8000, scoped, tag = 'input window, operand 4, single buffered']
    #allocation9 [shape = 's32[1]{0}', space=sflag, size = 0x4, scoped, tag = 'scoped memory for tpu_custom_call.1']
    #allocation10 [shape = 'u8[8192]{0}', space=vmem, size = 0x2000, scoped, tag = 'output window, operand 0']
    %11 = vsyncpa [#allocation3], 0
    %s12 = scalar_lea.sflag [#allocation3], 1
    %13 = vsyncpa %s12, 0
    %14 = vsyncpa [#allocation6], 0
    %15 = vsyncpa [#allocation9], 0
    %16 = vsyncpa [#allocation4], 0
    %s17 = scalar_lea.sflag [#allocation4], 1
    %18 = vsyncpa %s17, 0
    loop: start=0, step=1, limit=4
    $region2: #{tpu_custom_call.1} parent=1 // loop_pre_header
      _
    $region3: #{tpu_custom_call.1} parent=1 // loop_header
      %s20 = sphi 0, %s24
      %p21 = scmp.ge.s32.totalorder %s20, 4
      %s30 = sphi 0, %s32
      %s33 = sphi 0, %s30
      %s34 = sphi 0, %s33
      %s50 = sphi 0, %s34
      %s54 = sphi 0, %s54
      %s56 = sphi 0, %s54
      %s57 = sphi 0, %s56
      %s71 = sphi 0, %s57
      %s75 = sphi 0, %s75
      %s77 = sphi 0, %s75
      %s78 = sphi 0, %s77
      %s92 = sphi 0, %s78
      %s96 = sphi 0, %s96
      %s98 = sphi 0, %s96
      %s99 = sphi 0, %s98
      %s113 = sphi 0, %s99
      %s117 = sphi 0, %s117
      %s119 = sphi 0, %s117
      %s120 = sphi 0, %s119
      %s134 = sphi 0, %s120
      %s138 = sphi 0, %s138
      %s140 = sphi 0, %s138
      %s141 = sphi 0, %s140
      %s155 = sphi 0, %s141
      %s161 = sphi 0, %s163
      %s164 = sphi 0, %s161
      %s165 = sphi 0, %s164
      %s181 = sphi 0, %s165
    $region4: #{tpu_custom_call.1} parent=1 // loop_header_branch
      %23 = sbr.rel (%p21) target = $region8
    $region5: #{tpu_custom_call.1} parent=1 // loop_body
      %s25 = ssub.s32 %s20, 1
      %s26 = ssub.s32 %s20, 2
      %s27 = sadd.s32 %s20, 1
      %s28 = ssub.s32 %s20, %s27
      %p29 = scmp.eq.s32.totalorder %s28, 0
      %s31 = sadd.s32 %s30, 1
      %s32 = scalar_select %p29, %s30, %s31
      %p35 = pneg %p29
      %p36 = scmp.eq.s32.totalorder %s20, 1
      %p37 = por %p35, %p36
      %p38 = scmp.ne.s32.totalorder %s30, %s33
      %p39 = scmp.eq.s32.totalorder %s20, 0
      %p40 = por %p38, %p39
      %p41 = scmp.ne.s32.totalorder %s30, %s33
      %p42 = scmp.eq.s32.totalorder %s25, 1
      %p43 = por %p41, %p42
      %p44 = scmp.ne.s32.totalorder %s33, %s34
      %p45 = scmp.eq.s32.totalorder %s25, 0
      %p46 = por %p44, %p45
      %p47 = scmp.ne.s32.totalorder %s33, %s34
      %p48 = scmp.eq.s32.totalorder %s26, 1
      %p49 = por %p47, %p48
      %p51 = scmp.ne.s32.totalorder %s34, %s50
      %p52 = scmp.eq.s32.totalorder %s26, 0
      %p53 = por %p51, %p52
      %s55 = sadd.s32 %s54, 1
      %p58 = scmp.eq.s32.totalorder %s20, 1
      %p59 = scmp.ne.s32.totalorder %s54, %s56
      %p60 = scmp.eq.s32.totalorder %s20, 0
      %p61 = por %p59, %p60
      %p62 = scmp.ne.s32.totalorder %s54, %s56
      %p63 = scmp.eq.s32.totalorder %s25, 1
      %p64 = por %p62, %p63
      %p65 = scmp.ne.s32.totalorder %s56, %s57
      %p66 = scmp.eq.s32.totalorder %s25, 0
      %p67 = por %p65, %p66
      %p68 = scmp.ne.s32.totalorder %s56, %s57
      %p69 = scmp.eq.s32.totalorder %s26, 1
      %p70 = por %p68, %p69
      %p72 = scmp.ne.s32.totalorder %s57, %s71
      %p73 = scmp.eq.s32.totalorder %s26, 0
      %p74 = por %p72, %p73
      %s76 = sadd.s32 %s75, 1
      %p79 = scmp.eq.s32.totalorder %s20, 1
      %p80 = scmp.ne.s32.totalorder %s75, %s77
      %p81 = scmp.eq.s32.totalorder %s20, 0
      %p82 = por %p80, %p81
      %p83 = scmp.ne.s32.totalorder %s75, %s77
      %p84 = scmp.eq.s32.totalorder %s25, 1
      %p85 = por %p83, %p84
      %p86 = scmp.ne.s32.totalorder %s77, %s78
      %p87 = scmp.eq.s32.totalorder %s25, 0
      %p88 = por %p86, %p87
      %p89 = scmp.ne.s32.totalorder %s77, %s78
      %p90 = scmp.eq.s32.totalorder %s26, 1
      %p91 = por %p89, %p90
      %p93 = scmp.ne.s32.totalorder %s78, %s92
      %p94 = scmp.eq.s32.totalorder %s26, 0
      %p95 = por %p93, %p94
      %s97 = sadd.s32 %s96, 1
      %p100 = scmp.eq.s32.totalorder %s20, 1
      %p101 = scmp.ne.s32.totalorder %s96, %s98
      %p102 = scmp.eq.s32.totalorder %s20, 0
      %p103 = por %p101, %p102
      %p104 = scmp.ne.s32.totalorder %s96, %s98
      %p105 = scmp.eq.s32.totalorder %s25, 1
      %p106 = por %p104, %p105
      %p107 = scmp.ne.s32.totalorder %s98, %s99
      %p108 = scmp.eq.s32.totalorder %s25, 0
      %p109 = por %p107, %p108
      %p110 = scmp.ne.s32.totalorder %s98, %s99
      %p111 = scmp.eq.s32.totalorder %s26, 1
      %p112 = por %p110, %p111
      %p114 = scmp.ne.s32.totalorder %s99, %s113
      %p115 = scmp.eq.s32.totalorder %s26, 0
      %p116 = por %p114, %p115
      %s118 = sadd.s32 %s117, 1
      %p121 = scmp.eq.s32.totalorder %s20, 1
      %p122 = scmp.ne.s32.totalorder %s117, %s119
      %p123 = scmp.eq.s32.totalorder %s20, 0
      %p124 = por %p122, %p123
      %p125 = scmp.ne.s32.totalorder %s117, %s119
      %p126 = scmp.eq.s32.totalorder %s25, 1
      %p127 = por %p125, %p126
      %p128 = scmp.ne.s32.totalorder %s119, %s120
      %p129 = scmp.eq.s32.totalorder %s25, 0
      %p130 = por %p128, %p129
      %p131 = scmp.ne.s32.totalorder %s119, %s120
      %p132 = scmp.eq.s32.totalorder %s26, 1
      %p133 = por %p131, %p132
      %p135 = scmp.ne.s32.totalorder %s120, %s134
      %p136 = scmp.eq.s32.totalorder %s26, 0
      %p137 = por %p135, %p136
      %s139 = sadd.s32 %s138, 1
      %p142 = scmp.eq.s32.totalorder %s20, 1
      %p143 = scmp.ne.s32.totalorder %s138, %s140
      %p144 = scmp.eq.s32.totalorder %s20, 0
      %p145 = por %p143, %p144
      %p146 = scmp.ne.s32.totalorder %s138, %s140
      %p147 = scmp.eq.s32.totalorder %s25, 1
      %p148 = por %p146, %p147
      %p149 = scmp.ne.s32.totalorder %s140, %s141
      %p150 = scmp.eq.s32.totalorder %s25, 0
      %p151 = por %p149, %p150
      %p152 = scmp.ne.s32.totalorder %s140, %s141
      %p153 = scmp.eq.s32.totalorder %s26, 1
      %p154 = por %p152, %p153
      %p156 = scmp.ne.s32.totalorder %s141, %s155
      %p157 = scmp.eq.s32.totalorder %s26, 0
      %p158 = por %p156, %p157
      %s159 = ssub.s32 %s20, %s27
      %p160 = scmp.eq.s32.totalorder %s159, 0
      %s162 = sadd.s32 %s161, 1
      %s163 = scalar_select %p160, %s161, %s162
      %p166 = pneg %p160
      %p167 = scmp.eq.s32.totalorder %s20, 1
      %p168 = por %p166, %p167
      %p169 = scmp.ne.s32.totalorder %s161, %s164
      %p170 = scmp.eq.s32.totalorder %s20, 0
      %p171 = por %p169, %p170
      %p172 = scmp.ne.s32.totalorder %s161, %s164
      %p173 = scmp.eq.s32.totalorder %s25, 1
      %p174 = por %p172, %p173
      %p175 = scmp.ne.s32.totalorder %s164, %s165
      %p176 = scmp.eq.s32.totalorder %s25, 0
      %p177 = por %p175, %p176
      %p178 = scmp.ne.s32.totalorder %s164, %s165
      %p179 = scmp.eq.s32.totalorder %s26, 1
      %p180 = por %p178, %p179
      %p182 = scmp.ne.s32.totalorder %s165, %s181
      %p183 = scmp.eq.s32.totalorder %s26, 0
      %p184 = por %p182, %p183
      %p185 = scmp.le.s32.totalorder 1, %s20
      %p186 = scmp.lt.s32.totalorder %s20, 3
      %p187 = pnand %p185, %p186
      %p188 = pneg %p187
      // Predicated region
      $region9: #{tpu_custom_call.1} parent=5 // pred_check
        _
      $region10: #{tpu_custom_call.1} parent=5 // pred_check_branch
        %190 = sbr.rel (%p187) target = $region12
      $region11: #{tpu_custom_call.1} parent=5 // pred_region
        %s191 = ssub.s32 %s20, 1
        // Predicated region
        $region13: #{tpu_custom_call.1} parent=11 // pred_check
          %p192 = pneg %p67
        $region14: #{tpu_custom_call.1} parent=11 // pred_check_branch
          %194 = sbr.rel (%p192) target = $region16
        $region15: #{tpu_custom_call.1} parent=11 // pred_region
          %s196 = ssub.s32 1024, 1024
          %197 = vsyncadd [#allocation6], %s196
          %s198 = sshll.u32 [#allocation5], 4
          %s199 = int_to_ptr.vmem [resolvable:$true] %s198
          %204 = dma.hbm_to_vmem [thread:$0]  %s1, 1024, %s199, [#allocation6], 64, 64, 4
        $region16: #{tpu_custom_call.1} parent=11 // pred_fallthru
          _
        // Predicated region
        $region17: #{tpu_custom_call.1} parent=11 // pred_check
          %p205 = pneg %p88
        $region18: #{tpu_custom_call.1} parent=11 // pred_check_branch
          %207 = sbr.rel (%p205) target = $region20
        $region19: #{tpu_custom_call.1} parent=11 // pred_region
          %s209 = ssub.s32 256, 256
          %210 = vsyncadd [#allocation6], %s209
          %s211 = sshll.u32 [#allocation7], 4
          %s212 = int_to_ptr.vmem [resolvable:$true] %s211
          %217 = dma.hbm_to_vmem [thread:$0]  %s2, 256, %s212, [#allocation6], 128, 128, 8
        $region20: #{tpu_custom_call.1} parent=11 // pred_fallthru
          _
        // Predicated region
        $region21: #{tpu_custom_call.1} parent=11 // pred_check
          %p218 = pneg %p109
        $region22: #{tpu_custom_call.1} parent=11 // pred_check_branch
          %220 = sbr.rel (%p218) target = $region24
        $region23: #{tpu_custom_call.1} parent=11 // pred_region
          _
        $region24: #{tpu_custom_call.1} parent=11 // pred_fallthru
          _
        // Predicated region
        $region25: #{tpu_custom_call.1} parent=11 // pred_check
          %p221 = pneg %p130
        $region26: #{tpu_custom_call.1} parent=11 // pred_check_branch
          %223 = sbr.rel (%p221) target = $region28
        $region27: #{tpu_custom_call.1} parent=11 // pred_region
          %s225 = ssub.s32 1024, 1024
          %226 = vsyncadd [#allocation9], %s225
          %s227 = sshll.u32 [#allocation8], 4
          %s228 = int_to_ptr.vmem [resolvable:$true] %s227
          %233 = dma.hbm_to_vmem [thread:$0]  %s4, 1024, %s228, [#allocation9], 64, 64, 4
        $region28: #{tpu_custom_call.1} parent=11 // pred_fallthru
          _
        // Predicated region
        $region29: #{tpu_custom_call.1} parent=11 // pred_check
          %p234 = pneg %p151
        $region30: #{tpu_custom_call.1} parent=11 // pred_check_branch
          %236 = sbr.rel (%p234) target = $region32
        $region31: #{tpu_custom_call.1} parent=11 // pred_region
          _
        $region32: #{tpu_custom_call.1} parent=11 // pred_fallthru
          _
      $region12: #{tpu_custom_call.1} parent=5 // pred_fallthru
        _
      %p237 = scmp.lt.s32.totalorder %s20, 2
      // Predicated region
      $region33: #{tpu_custom_call.1} parent=5 // pred_check
        %p238 = pneg %p237
      $region34: #{tpu_custom_call.1} parent=5 // pred_check_branch
        %240 = sbr.rel (%p238) target = $region36
      $region35: #{tpu_custom_call.1} parent=5 // pred_region
        // Predicated region
        $region37: #{tpu_custom_call.1} parent=35 // pred_check
          %p241 = pneg %p40
        $region38: #{tpu_custom_call.1} parent=35 // pred_check_branch
          %243 = sbr.rel (%p241) target = $region40
        $region39: #{tpu_custom_call.1} parent=35 // pred_region
          %s244 = sand.u32 %s30, 1
          %s245 = scalar_lea.sflag [#allocation3], %s244
          %s246 = sand.u32 %s30, 1
          %s247 = smul.addr %s246, 8
          %s248 = scalar_lea.vmem [#allocation2], %s247
          %s250 = ssub.s32 128, 128
          %251 = vsyncadd %s245, %s250
          %s252 = smul.addr %s20, 128
          %s253 = scalar_lea.hbm %s0, %s252
          %s255 = sshll.u32 %s248, 4
          %s256 = int_to_ptr.vmem [resolvable:$true] %s255
          %258 = dma.hbm_to_vmem [thread:$0]  %s253, 128, %s256, %s245
        $region40: #{tpu_custom_call.1} parent=35 // pred_fallthru
          _
      $region36: #{tpu_custom_call.1} parent=5 // pred_fallthru
        _
      %p259 = scmp.le.s32.totalorder 1, %s20
      %p260 = scmp.lt.s32.totalorder %s20, 3
      %p261 = pnand %p259, %p260
      %p262 = pneg %p261
      // Predicated region
      $region41: #{tpu_custom_call.1} parent=5 // pred_check
        _
      $region42: #{tpu_custom_call.1} parent=5 // pred_check_branch
        %264 = sbr.rel (%p261) target = $region44
      $region43: #{tpu_custom_call.1} parent=5 // pred_region
        %s265 = ssub.s32 %s20, 1
        %s266 = sand.u32 %s33, 1
        %s267 = scalar_lea.sflag [#allocation3], %s266
        %s268 = sand.u32 %s33, 1
        %s269 = smul.addr %s268, 8
        %s270 = scalar_lea.vmem [#allocation2], %s269
        // Predicated region
        $region45: #{tpu_custom_call.1} parent=43 // pred_check
          %p271 = pneg %p46
        $region46: #{tpu_custom_call.1} parent=43 // pred_check_branch
          %273 = sbr.rel (%p271) target = $region48
        $region47: #{tpu_custom_call.1} parent=43 // pred_region
          %274 = dma.done %s267, 128
        $region48: #{tpu_custom_call.1} parent=43 // pred_fallthru
          _
        // Predicated region
        $region49: #{tpu_custom_call.1} parent=43 // pred_check
          %p275 = pneg %p67
        $region50: #{tpu_custom_call.1} parent=43 // pred_check_branch
          %277 = sbr.rel (%p275) target = $region52
        $region51: #{tpu_custom_call.1} parent=43 // pred_region
          %278 = dma.done [#allocation6], 1024
        $region52: #{tpu_custom_call.1} parent=43 // pred_fallthru
          _
        // Predicated region
        $region53: #{tpu_custom_call.1} parent=43 // pred_check
          %p279 = pneg %p88
        $region54: #{tpu_custom_call.1} parent=43 // pred_check_branch
          %281 = sbr.rel (%p279) target = $region56
        $region55: #{tpu_custom_call.1} parent=43 // pred_region
          %282 = dma.done [#allocation6], 256
        $region56: #{tpu_custom_call.1} parent=43 // pred_fallthru
          _
        // Predicated region
        $region57: #{tpu_custom_call.1} parent=43 // pred_check
          %p283 = pneg %p130
        $region58: #{tpu_custom_call.1} parent=43 // pred_check_branch
          %285 = sbr.rel (%p283) target = $region60
        $region59: #{tpu_custom_call.1} parent=43 // pred_region
          %286 = dma.done [#allocation9], 1024
        $region60: #{tpu_custom_call.1} parent=43 // pred_fallthru
          _
        %s287 = sand.u32 %s33, 1
        %s288 = scalar_lea.sflag [#allocation3], %s287
        %s289 = sand.u32 %s33, 1
        %s290 = smul.addr %s289, 8
        %s291 = scalar_lea.vmem [#allocation2], %s290
        %p292 = pneg %p46
        %p293 = pneg %p43
        %p294 = pneg %p67
        %p295 = pneg %p64
        %p296 = pneg %p88
        %p297 = pneg %p85
        %p298 = pneg %p109
        %p299 = pneg %p106
        %p300 = pneg %p130
        %p301 = pneg %p127
        %p302 = pneg %p151
        %p303 = pneg %p148
        %p304 = pneg %p177
        %p305 = pneg %p174
        %s306 = sand.u32 %s164, 1
        %s307 = scalar_lea.sflag [#allocation4], %s306
        %s308 = sand.u32 %s164, 1
        %s309 = smul.addr %s308, 8
        %s310 = scalar_lea.vmem [#allocation10], %s309
        %v312 = vld [vmem:[%s270] sm:$0xff]
        %v313 = vlaneseq
        %v314 = vand.u32 %v313, 127
        %v315 = vlaneseq
        %v316 = vshrl.u32 %v315, 7
        %v317 = vsub.s32 0, %v316
        %v318 = vrot.slane %v312, %v317
        %320 = vbcast.lane.b32.xlu0 %v318, 256
        %v321 = vpop.permute.xlu0 %320
        %s323 = sor.u32 256, 8
        %324 = vbcast.lane.b32.xlu0 %v318, %s323
        %v325 = vpop.permute.xlu0 %324
        %v326 = vlaneseq
        %v327 = vshrl.u32 %v326, 7
        %v328 = vsub.s32 1, %v327
        %v329 = vrot.slane %v312, %v328
        %331 = vbcast.lane.b32.xlu0 %v329, 256
        %v332 = vpop.permute.xlu0 %331
        %s334 = sor.u32 256, 8
        %335 = vbcast.lane.b32.xlu0 %v329, %s334
        %v336 = vpop.permute.xlu0 %335
        %v337 = vlaneseq
        %v338 = vshrl.u32 %v337, 7
        %v339 = vsub.s32 2, %v338
        %v340 = vrot.slane %v312, %v339
        %342 = vbcast.lane.b32.xlu0 %v340, 256
        %v343 = vpop.permute.xlu0 %342
        %s345 = sor.u32 256, 8
        %346 = vbcast.lane.b32.xlu0 %v340, %s345
        %v347 = vpop.permute.xlu0 %346
        %v348 = vlaneseq
        %v349 = vshrl.u32 %v348, 7
        %v350 = vsub.s32 3, %v349
        %v351 = vrot.slane %v312, %v350
        %353 = vbcast.lane.b32.xlu0 %v351, 256
        %v354 = vpop.permute.xlu0 %353
        %s356 = sor.u32 256, 8
        %357 = vbcast.lane.b32.xlu0 %v351, %s356
        %v358 = vpop.permute.xlu0 %357
        %v359 = vlaneseq
        %v360 = vshrl.u32 %v359, 7
        %v361 = vsub.s32 4, %v360
        %v362 = vrot.slane %v312, %v361
        %364 = vbcast.lane.b32.xlu0 %v362, 256
        %v365 = vpop.permute.xlu0 %364
        %s367 = sor.u32 256, 8
        %368 = vbcast.lane.b32.xlu0 %v362, %s367
        %v369 = vpop.permute.xlu0 %368
        %v370 = vlaneseq
        %v371 = vshrl.u32 %v370, 7
        %v372 = vsub.s32 5, %v371
        %v373 = vrot.slane %v312, %v372
        %375 = vbcast.lane.b32.xlu0 %v373, 256
        %v376 = vpop.permute.xlu0 %375
        %s378 = sor.u32 256, 8
        %379 = vbcast.lane.b32.xlu0 %v373, %s378
        %v380 = vpop.permute.xlu0 %379
        %v381 = vlaneseq
        %v382 = vshrl.u32 %v381, 7
        %v383 = vsub.s32 6, %v382
        %v384 = vrot.slane %v312, %v383
        %386 = vbcast.lane.b32.xlu0 %v384, 256
        %v387 = vpop.permute.xlu0 %386
        %s389 = sor.u32 256, 8
        %390 = vbcast.lane.b32.xlu0 %v384, %s389
        %v391 = vpop.permute.xlu0 %390
        %v392 = vlaneseq
        %v393 = vshrl.u32 %v392, 7
        %v394 = vsub.s32 7, %v393
        %v395 = vrot.slane %v312, %v394
        %397 = vbcast.lane.b32.xlu0 %v395, 256
        %v398 = vpop.permute.xlu0 %397
        %s400 = sor.u32 256, 8
        %401 = vbcast.lane.b32.xlu0 %v395, %s400
        %v402 = vpop.permute.xlu0 %401
        %vm403 = vcmp.eq.s32.totalorder %v321, %v314
        %vm404 = vcmp.eq.s32.totalorder %v325, %v314
        %vm405 = vcmp.eq.s32.totalorder %v332, %v314
        %vm406 = vcmp.eq.s32.totalorder %v336, %v314
        %vm407 = vcmp.eq.s32.totalorder %v343, %v314
        %vm408 = vcmp.eq.s32.totalorder %v347, %v314
        %vm409 = vcmp.eq.s32.totalorder %v354, %v314
        %vm410 = vcmp.eq.s32.totalorder %v358, %v314
        %vm411 = vcmp.eq.s32.totalorder %v365, %v314
        %vm412 = vcmp.eq.s32.totalorder %v369, %v314
        %vm413 = vcmp.eq.s32.totalorder %v376, %v314
        %vm414 = vcmp.eq.s32.totalorder %v380, %v314
        %vm415 = vcmp.eq.s32.totalorder %v387, %v314
        %vm416 = vcmp.eq.s32.totalorder %v391, %v314
        %vm417 = vcmp.eq.s32.totalorder %v398, %v314
        %vm418 = vcmp.eq.s32.totalorder %v402, %v314
        %v419 = vsel %vm403, 1, 0
        %v420 = vsel %vm404, 1, 0
        %v421 = vsel %vm405, 1, 0
        %v422 = vsel %vm406, 1, 0
        %v423 = vsel %vm407, 1, 0
        %v424 = vsel %vm408, 1, 0
        %v425 = vsel %vm409, 1, 0
        %v426 = vsel %vm410, 1, 0
        %v427 = vsel %vm411, 1, 0
        %v428 = vsel %vm412, 1, 0
        %v429 = vsel %vm413, 1, 0
        %v430 = vsel %vm414, 1, 0
        %v431 = vsel %vm415, 1, 0
        %v432 = vsel %vm416, 1, 0
        %v433 = vsel %vm417, 1, 0
        %v434 = vsel %vm418, 1, 0
        %v435 = vcvt.s32.f32 %v419
        %v436 = vcvt.s32.f32 %v420
        %v437 = vcvt.s32.f32 %v421
        %v438 = vcvt.s32.f32 %v422
        %v439 = vcvt.s32.f32 %v423
        %v440 = vcvt.s32.f32 %v424
        %v441 = vcvt.s32.f32 %v425
        %v442 = vcvt.s32.f32 %v426
        %v443 = vcvt.s32.f32 %v427
        %v444 = vcvt.s32.f32 %v428
        %v445 = vcvt.s32.f32 %v429
        %v446 = vcvt.s32.f32 %v430
        %v447 = vcvt.s32.f32 %v431
        %v448 = vcvt.s32.f32 %v432
        %v449 = vcvt.s32.f32 %v433
        %v450 = vcvt.s32.f32 %v434
        %v451 = vpack.c.bf16 %v436, %v435
        %v452 = vpack.c.bf16 %v438, %v437
        %v453 = vpack.c.bf16 %v440, %v439
        %v454 = vpack.c.bf16 %v442, %v441
        %v455 = vpack.c.bf16 %v444, %v443
        %v456 = vpack.c.bf16 %v446, %v445
        %v457 = vpack.c.bf16 %v448, %v447
        %v458 = vpack.c.bf16 %v450, %v449
        %v459 = vadd.bf16 %v451, 0
        %v460 = vadd.bf16 %v452, 0
        %v461 = vadd.bf16 %v453, 0
        %v462 = vadd.bf16 %v454, 0
        %v463 = vadd.bf16 %v455, 0
        %v464 = vadd.bf16 %v456, 0
        %v465 = vadd.bf16 %v457, 0
        %v466 = vadd.bf16 %v458, 0
        %v467 = vadd.s32 %v312, 20
        %v468 = vlaneseq
        %v469 = vshrl.u32 %v468, 7
        %v470 = vsub.s32 0, %v469
        %v471 = vrot.slane %v467, %v470
        %s473 = sor.u32 256, 1
        %474 = vbcast.lane.b32.xlu0 %v471, %s473
        %v475 = vpop.permute.xlu0 %474
        %s477 = sor.u32 256, 9
        %478 = vbcast.lane.b32.xlu0 %v471, %s477
        %v479 = vpop.permute.xlu0 %478
        %v480 = vlaneseq
        %v481 = vshrl.u32 %v480, 7
        %v482 = vsub.s32 1, %v481
        %v483 = vrot.slane %v467, %v482
        %s485 = sor.u32 256, 1
        %486 = vbcast.lane.b32.xlu0 %v483, %s485
        %v487 = vpop.permute.xlu0 %486
        %s489 = sor.u32 256, 9
        %490 = vbcast.lane.b32.xlu0 %v483, %s489
        %v491 = vpop.permute.xlu0 %490
        %v492 = vlaneseq
        %v493 = vshrl.u32 %v492, 7
        %v494 = vsub.s32 2, %v493
        %v495 = vrot.slane %v467, %v494
        %s497 = sor.u32 256, 1
        %498 = vbcast.lane.b32.xlu0 %v495, %s497
        %v499 = vpop.permute.xlu0 %498
        %s501 = sor.u32 256, 9
        %502 = vbcast.lane.b32.xlu0 %v495, %s501
        %v503 = vpop.permute.xlu0 %502
        %v504 = vlaneseq
        %v505 = vshrl.u32 %v504, 7
        %v506 = vsub.s32 3, %v505
        %v507 = vrot.slane %v467, %v506
        %s509 = sor.u32 256, 1
        %510 = vbcast.lane.b32.xlu0 %v507, %s509
        %v511 = vpop.permute.xlu0 %510
        %s513 = sor.u32 256, 9
        %514 = vbcast.lane.b32.xlu0 %v507, %s513
        %v515 = vpop.permute.xlu0 %514
        %v516 = vlaneseq
        %v517 = vshrl.u32 %v516, 7
        %v518 = vsub.s32 4, %v517
        %v519 = vrot.slane %v467, %v518
        %s521 = sor.u32 256, 1
        %522 = vbcast.lane.b32.xlu0 %v519, %s521
        %v523 = vpop.permute.xlu0 %522
        %s525 = sor.u32 256, 9
        %526 = vbcast.lane.b32.xlu0 %v519, %s525
        %v527 = vpop.permute.xlu0 %526
        %v528 = vlaneseq
        %v529 = vshrl.u32 %v528, 7
        %v530 = vsub.s32 5, %v529
        %v531 = vrot.slane %v467, %v530
        %s533 = sor.u32 256, 1
        %534 = vbcast.lane.b32.xlu0 %v531, %s533
        %v535 = vpop.permute.xlu0 %534
        %s537 = sor.u32 256, 9
        %538 = vbcast.lane.b32.xlu0 %v531, %s537
        %v539 = vpop.permute.xlu0 %538
        %v540 = vlaneseq
        %v541 = vshrl.u32 %v540, 7
        %v542 = vsub.s32 6, %v541
        %v543 = vrot.slane %v467, %v542
        %s545 = sor.u32 256, 1
        %546 = vbcast.lane.b32.xlu0 %v543, %s545
        %v547 = vpop.permute.xlu0 %546
        %s549 = sor.u32 256, 9
        %550 = vbcast.lane.b32.xlu0 %v543, %s549
        %v551 = vpop.permute.xlu0 %550
        %v552 = vlaneseq
        %v553 = vshrl.u32 %v552, 7
        %v554 = vsub.s32 7, %v553
        %v555 = vrot.slane %v467, %v554
        %s557 = sor.u32 256, 1
        %558 = vbcast.lane.b32.xlu0 %v555, %s557
        %v559 = vpop.permute.xlu0 %558
        %s561 = sor.u32 256, 9
        %562 = vbcast.lane.b32.xlu0 %v555, %s561
        %v563 = vpop.permute.xlu0 %562
        %vm564 = vcmp.eq.s32.totalorder %v475, %v314
        %vm565 = vcmp.eq.s32.totalorder %v479, %v314
        %vm566 = vcmp.eq.s32.totalorder %v487, %v314
        %vm567 = vcmp.eq.s32.totalorder %v491, %v314
        %vm568 = vcmp.eq.s32.totalorder %v499, %v314
        %vm569 = vcmp.eq.s32.totalorder %v503, %v314
        %vm570 = vcmp.eq.s32.totalorder %v511, %v314
        %vm571 = vcmp.eq.s32.totalorder %v515, %v314
        %vm572 = vcmp.eq.s32.totalorder %v523, %v314
        %vm573 = vcmp.eq.s32.totalorder %v527, %v314
        %vm574 = vcmp.eq.s32.totalorder %v535, %v314
        %vm575 = vcmp.eq.s32.totalorder %v539, %v314
        %vm576 = vcmp.eq.s32.totalorder %v547, %v314
        %vm577 = vcmp.eq.s32.totalorder %v551, %v314
        %vm578 = vcmp.eq.s32.totalorder %v559, %v314
        %vm579 = vcmp.eq.s32.totalorder %v563, %v314
        %v580 = vsel %vm564, 1, 0
        %v581 = vsel %vm565, 1, 0
        %v582 = vsel %vm566, 1, 0
        %v583 = vsel %vm567, 1, 0
        %v584 = vsel %vm568, 1, 0
        %v585 = vsel %vm569, 1, 0
        %v586 = vsel %vm570, 1, 0
        %v587 = vsel %vm571, 1, 0
        %v588 = vsel %vm572, 1, 0
        %v589 = vsel %vm573, 1, 0
        %v590 = vsel %vm574, 1, 0
        %v591 = vsel %vm575, 1, 0
        %v592 = vsel %vm576, 1, 0
        %v593 = vsel %vm577, 1, 0
        %v594 = vsel %vm578, 1, 0
        %v595 = vsel %vm579, 1, 0
        %v596 = vcvt.s32.f32 %v580
        %v597 = vcvt.s32.f32 %v581
        %v598 = vcvt.s32.f32 %v582
        %v599 = vcvt.s32.f32 %v583
        %v600 = vcvt.s32.f32 %v584
        %v601 = vcvt.s32.f32 %v585
        %v602 = vcvt.s32.f32 %v586
        %v603 = vcvt.s32.f32 %v587
        %v604 = vcvt.s32.f32 %v588
        %v605 = vcvt.s32.f32 %v589
        %v606 = vcvt.s32.f32 %v590
        %v607 = vcvt.s32.f32 %v591
        %v608 = vcvt.s32.f32 %v592
        %v609 = vcvt.s32.f32 %v593
        %v610 = vcvt.s32.f32 %v594
        %v611 = vcvt.s32.f32 %v595
        %v612 = vpack.c.bf16 %v597, %v596
        %v613 = vpack.c.bf16 %v599, %v598
        %v614 = vpack.c.bf16 %v601, %v600
        %v615 = vpack.c.bf16 %v603, %v602
        %v616 = vpack.c.bf16 %v605, %v604
        %v617 = vpack.c.bf16 %v607, %v606
        %v618 = vpack.c.bf16 %v609, %v608
        %v619 = vpack.c.bf16 %v611, %v610
        %v620 = vadd.bf16 %v459, %v612
        %v621 = vadd.bf16 %v460, %v613
        %v622 = vadd.bf16 %v461, %v614
        %v623 = vadd.bf16 %v462, %v615
        %v624 = vadd.bf16 %v463, %v616
        %v625 = vadd.bf16 %v464, %v617
        %v626 = vadd.bf16 %v465, %v618
        %v627 = vadd.bf16 %v466, %v619
        %v628 = vadd.s32 %v312, 40
        %v629 = vlaneseq
        %v630 = vshrl.u32 %v629, 7
        %v631 = vsub.s32 0, %v630
        %v632 = vrot.slane %v628, %v631
        %s634 = sor.u32 256, 2
        %635 = vbcast.lane.b32.xlu0 %v632, %s634
        %v636 = vpop.permute.xlu0 %635
        %s638 = sor.u32 256, 10
        %639 = vbcast.lane.b32.xlu0 %v632, %s638
        %v640 = vpop.permute.xlu0 %639
        %v641 = vlaneseq
        %v642 = vshrl.u32 %v641, 7
        %v643 = vsub.s32 1, %v642
        %v644 = vrot.slane %v628, %v643
        %s646 = sor.u32 256, 2
        %647 = vbcast.lane.b32.xlu0 %v644, %s646
        %v648 = vpop.permute.xlu0 %647
        %s650 = sor.u32 256, 10
        %651 = vbcast.lane.b32.xlu0 %v644, %s650
        %v652 = vpop.permute.xlu0 %651
        %v653 = vlaneseq
        %v654 = vshrl.u32 %v653, 7
        %v655 = vsub.s32 2, %v654
        %v656 = vrot.slane %v628, %v655
        %s658 = sor.u32 256, 2
        %659 = vbcast.lane.b32.xlu0 %v656, %s658
        %v660 = vpop.permute.xlu0 %659
        %s662 = sor.u32 256, 10
        %663 = vbcast.lane.b32.xlu0 %v656, %s662
        %v664 = vpop.permute.xlu0 %663
        %v665 = vlaneseq
        %v666 = vshrl.u32 %v665, 7
        %v667 = vsub.s32 3, %v666
        %v668 = vrot.slane %v628, %v667
        %s670 = sor.u32 256, 2
        %671 = vbcast.lane.b32.xlu0 %v668, %s670
        %v672 = vpop.permute.xlu0 %671
        %s674 = sor.u32 256, 10
        %675 = vbcast.lane.b32.xlu0 %v668, %s674
        %v676 = vpop.permute.xlu0 %675
        %v677 = vlaneseq
        %v678 = vshrl.u32 %v677, 7
        %v679 = vsub.s32 4, %v678
        %v680 = vrot.slane %v628, %v679
        %s682 = sor.u32 256, 2
        %683 = vbcast.lane.b32.xlu0 %v680, %s682
        %v684 = vpop.permute.xlu0 %683
        %s686 = sor.u32 256, 10
        %687 = vbcast.lane.b32.xlu0 %v680, %s686
        %v688 = vpop.permute.xlu0 %687
        %v689 = vlaneseq
        %v690 = vshrl.u32 %v689, 7
        %v691 = vsub.s32 5, %v690
        %v692 = vrot.slane %v628, %v691
        %s694 = sor.u32 256, 2
        %695 = vbcast.lane.b32.xlu0 %v692, %s694
        %v696 = vpop.permute.xlu0 %695
        %s698 = sor.u32 256, 10
        %699 = vbcast.lane.b32.xlu0 %v692, %s698
        %v700 = vpop.permute.xlu0 %699
        %v701 = vlaneseq
        %v702 = vshrl.u32 %v701, 7
        %v703 = vsub.s32 6, %v702
        %v704 = vrot.slane %v628, %v703
        %s706 = sor.u32 256, 2
        %707 = vbcast.lane.b32.xlu0 %v704, %s706
        %v708 = vpop.permute.xlu0 %707
        %s710 = sor.u32 256, 10
        %711 = vbcast.lane.b32.xlu0 %v704, %s710
        %v712 = vpop.permute.xlu0 %711
        %v713 = vlaneseq
        %v714 = vshrl.u32 %v713, 7
        %v715 = vsub.s32 7, %v714
        %v716 = vrot.slane %v628, %v715
        %s718 = sor.u32 256, 2
        %719 = vbcast.lane.b32.xlu0 %v716, %s718
        %v720 = vpop.permute.xlu0 %719
        %s722 = sor.u32 256, 10
        %723 = vbcast.lane.b32.xlu0 %v716, %s722
        %v724 = vpop.permute.xlu0 %723
        %vm725 = vcmp.eq.s32.totalorder %v636, %v314
        %vm726 = vcmp.eq.s32.totalorder %v640, %v314
        %vm727 = vcmp.eq.s32.totalorder %v648, %v314
        %vm728 = vcmp.eq.s32.totalorder %v652, %v314
        %vm729 = vcmp.eq.s32.totalorder %v660, %v314
        %vm730 = vcmp.eq.s32.totalorder %v664, %v314
        %vm731 = vcmp.eq.s32.totalorder %v672, %v314
        %vm732 = vcmp.eq.s32.totalorder %v676, %v314
        %vm733 = vcmp.eq.s32.totalorder %v684, %v314
        %vm734 = vcmp.eq.s32.totalorder %v688, %v314
        %vm735 = vcmp.eq.s32.totalorder %v696, %v314
        %vm736 = vcmp.eq.s32.totalorder %v700, %v314
        %vm737 = vcmp.eq.s32.totalorder %v708, %v314
        %vm738 = vcmp.eq.s32.totalorder %v712, %v314
        %vm739 = vcmp.eq.s32.totalorder %v720, %v314
        %vm740 = vcmp.eq.s32.totalorder %v724, %v314
        %v741 = vsel %vm725, 1, 0
        %v742 = vsel %vm726, 1, 0
        %v743 = vsel %vm727, 1, 0
        %v744 = vsel %vm728, 1, 0
        %v745 = vsel %vm729, 1, 0
        %v746 = vsel %vm730, 1, 0
        %v747 = vsel %vm731, 1, 0
        %v748 = vsel %vm732, 1, 0
        %v749 = vsel %vm733, 1, 0
        %v750 = vsel %vm734, 1, 0
        %v751 = vsel %vm735, 1, 0
        %v752 = vsel %vm736, 1, 0
        %v753 = vsel %vm737, 1, 0
        %v754 = vsel %vm738, 1, 0
        %v755 = vsel %vm739, 1, 0
        %v756 = vsel %vm740, 1, 0
        %v757 = vcvt.s32.f32 %v741
        %v758 = vcvt.s32.f32 %v742
        %v759 = vcvt.s32.f32 %v743
        %v760 = vcvt.s32.f32 %v744
        %v761 = vcvt.s32.f32 %v745
        %v762 = vcvt.s32.f32 %v746
        %v763 = vcvt.s32.f32 %v747
        %v764 = vcvt.s32.f32 %v748
        %v765 = vcvt.s32.f32 %v749
        %v766 = vcvt.s32.f32 %v750
        %v767 = vcvt.s32.f32 %v751
        %v768 = vcvt.s32.f32 %v752
        %v769 = vcvt.s32.f32 %v753
        %v770 = vcvt.s32.f32 %v754
        %v771 = vcvt.s32.f32 %v755
        %v772 = vcvt.s32.f32 %v756
        %v773 = vpack.c.bf16 %v758, %v757
        %v774 = vpack.c.bf16 %v760, %v759
        %v775 = vpack.c.bf16 %v762, %v761
        %v776 = vpack.c.bf16 %v764, %v763
        %v777 = vpack.c.bf16 %v766, %v765
        %v778 = vpack.c.bf16 %v768, %v767
        %v779 = vpack.c.bf16 %v770, %v769
        %v780 = vpack.c.bf16 %v772, %v771
        %v781 = vadd.bf16 %v620, %v773
        %v782 = vadd.bf16 %v621, %v774
        %v783 = vadd.bf16 %v622, %v775
        %v784 = vadd.bf16 %v623, %v776
        %v785 = vadd.bf16 %v624, %v777
        %v786 = vadd.bf16 %v625, %v778
        %v787 = vadd.bf16 %v626, %v779
        %v788 = vadd.bf16 %v627, %v780
        %v789 = vadd.s32 %v312, 60
        %v790 = vlaneseq
        %v791 = vshrl.u32 %v790, 7
        %v792 = vsub.s32 0, %v791
        %v793 = vrot.slane %v789, %v792
        %s795 = sor.u32 256, 3
        %796 = vbcast.lane.b32.xlu0 %v793, %s795
        %v797 = vpop.permute.xlu0 %796
        %s799 = sor.u32 256, 11
        %800 = vbcast.lane.b32.xlu0 %v793, %s799
        %v801 = vpop.permute.xlu0 %800
        %v802 = vlaneseq
        %v803 = vshrl.u32 %v802, 7
        %v804 = vsub.s32 1, %v803
        %v805 = vrot.slane %v789, %v804
        %s807 = sor.u32 256, 3
        %808 = vbcast.lane.b32.xlu0 %v805, %s807
        %v809 = vpop.permute.xlu0 %808
        %s811 = sor.u32 256, 11
        %812 = vbcast.lane.b32.xlu0 %v805, %s811
        %v813 = vpop.permute.xlu0 %812
        %v814 = vlaneseq
        %v815 = vshrl.u32 %v814, 7
        %v816 = vsub.s32 2, %v815
        %v817 = vrot.slane %v789, %v816
        %s819 = sor.u32 256, 3
        %820 = vbcast.lane.b32.xlu0 %v817, %s819
        %v821 = vpop.permute.xlu0 %820
        %s823 = sor.u32 256, 11
        %824 = vbcast.lane.b32.xlu0 %v817, %s823
        %v825 = vpop.permute.xlu0 %824
        %v826 = vlaneseq
        %v827 = vshrl.u32 %v826, 7
        %v828 = vsub.s32 3, %v827
        %v829 = vrot.slane %v789, %v828
        %s831 = sor.u32 256, 3
        %832 = vbcast.lane.b32.xlu0 %v829, %s831
        %v833 = vpop.permute.xlu0 %832
        %s835 = sor.u32 256, 11
        %836 = vbcast.lane.b32.xlu0 %v829, %s835
        %v837 = vpop.permute.xlu0 %836
        %v838 = vlaneseq
        %v839 = vshrl.u32 %v838, 7
        %v840 = vsub.s32 4, %v839
        %v841 = vrot.slane %v789, %v840
        %s843 = sor.u32 256, 3
        %844 = vbcast.lane.b32.xlu0 %v841, %s843
        %v845 = vpop.permute.xlu0 %844
        %s847 = sor.u32 256, 11
        %848 = vbcast.lane.b32.xlu0 %v841, %s847
        %v849 = vpop.permute.xlu0 %848
        %v850 = vlaneseq
        %v851 = vshrl.u32 %v850, 7
        %v852 = vsub.s32 5, %v851
        %v853 = vrot.slane %v789, %v852
        %s855 = sor.u32 256, 3
        %856 = vbcast.lane.b32.xlu0 %v853, %s855
        %v857 = vpop.permute.xlu0 %856
        %s859 = sor.u32 256, 11
        %860 = vbcast.lane.b32.xlu0 %v853, %s859
        %v861 = vpop.permute.xlu0 %860
        %v862 = vlaneseq
        %v863 = vshrl.u32 %v862, 7
        %v864 = vsub.s32 6, %v863
        %v865 = vrot.slane %v789, %v864
        %s867 = sor.u32 256, 3
        %868 = vbcast.lane.b32.xlu0 %v865, %s867
        %v869 = vpop.permute.xlu0 %868
        %s871 = sor.u32 256, 11
        %872 = vbcast.lane.b32.xlu0 %v865, %s871
        %v873 = vpop.permute.xlu0 %872
        %v874 = vlaneseq
        %v875 = vshrl.u32 %v874, 7
        %v876 = vsub.s32 7, %v875
        %v877 = vrot.slane %v789, %v876
        %s879 = sor.u32 256, 3
        %880 = vbcast.lane.b32.xlu0 %v877, %s879
        %v881 = vpop.permute.xlu0 %880
        %s883 = sor.u32 256, 11
        %884 = vbcast.lane.b32.xlu0 %v877, %s883
        %v885 = vpop.permute.xlu0 %884
        %vm886 = vcmp.eq.s32.totalorder %v797, %v314
        %vm887 = vcmp.eq.s32.totalorder %v801, %v314
        %vm888 = vcmp.eq.s32.totalorder %v809, %v314
        %vm889 = vcmp.eq.s32.totalorder %v813, %v314
        %vm890 = vcmp.eq.s32.totalorder %v821, %v314
        %vm891 = vcmp.eq.s32.totalorder %v825, %v314
        %vm892 = vcmp.eq.s32.totalorder %v833, %v314
        %vm893 = vcmp.eq.s32.totalorder %v837, %v314
        %vm894 = vcmp.eq.s32.totalorder %v845, %v314
        %vm895 = vcmp.eq.s32.totalorder %v849, %v314
        %vm896 = vcmp.eq.s32.totalorder %v857, %v314
        %vm897 = vcmp.eq.s32.totalorder %v861, %v314
        %vm898 = vcmp.eq.s32.totalorder %v869, %v314
        %vm899 = vcmp.eq.s32.totalorder %v873, %v314
        %vm900 = vcmp.eq.s32.totalorder %v881, %v314
        %vm901 = vcmp.eq.s32.totalorder %v885, %v314
        %v902 = vsel %vm886, 1, 0
        %v903 = vsel %vm887, 1, 0
        %v904 = vsel %vm888, 1, 0
        %v905 = vsel %vm889, 1, 0
        %v906 = vsel %vm890, 1, 0
        %v907 = vsel %vm891, 1, 0
        %v908 = vsel %vm892, 1, 0
        %v909 = vsel %vm893, 1, 0
        %v910 = vsel %vm894, 1, 0
        %v911 = vsel %vm895, 1, 0
        %v912 = vsel %vm896, 1, 0
        %v913 = vsel %vm897, 1, 0
        %v914 = vsel %vm898, 1, 0
        %v915 = vsel %vm899, 1, 0
        %v916 = vsel %vm900, 1, 0
        %v917 = vsel %vm901, 1, 0
        %v918 = vcvt.s32.f32 %v902
        %v919 = vcvt.s32.f32 %v903
        %v920 = vcvt.s32.f32 %v904
        %v921 = vcvt.s32.f32 %v905
        %v922 = vcvt.s32.f32 %v906
        %v923 = vcvt.s32.f32 %v907
        %v924 = vcvt.s32.f32 %v908
        %v925 = vcvt.s32.f32 %v909
        %v926 = vcvt.s32.f32 %v910
        %v927 = vcvt.s32.f32 %v911
        %v928 = vcvt.s32.f32 %v912
        %v929 = vcvt.s32.f32 %v913
        %v930 = vcvt.s32.f32 %v914
        %v931 = vcvt.s32.f32 %v915
        %v932 = vcvt.s32.f32 %v916
        %v933 = vcvt.s32.f32 %v917
        %v934 = vpack.c.bf16 %v919, %v918
        %v935 = vpack.c.bf16 %v921, %v920
        %v936 = vpack.c.bf16 %v923, %v922
        %v937 = vpack.c.bf16 %v925, %v924
        %v938 = vpack.c.bf16 %v927, %v926
        %v939 = vpack.c.bf16 %v929, %v928
        %v940 = vpack.c.bf16 %v931, %v930
        %v941 = vpack.c.bf16 %v933, %v932
        %v942 = vadd.bf16 %v781, %v934
        %v943 = vadd.bf16 %v782, %v935
        %v944 = vadd.bf16 %v783, %v936
        %v945 = vadd.bf16 %v784, %v937
        %v946 = vadd.bf16 %v785, %v938
        %v947 = vadd.bf16 %v786, %v939
        %v948 = vadd.bf16 %v787, %v940
        %v949 = vadd.bf16 %v788, %v941
        %v950 = vadd.s32 %v312, 80
        %v951 = vlaneseq
        %v952 = vshrl.u32 %v951, 7
        %v953 = vsub.s32 0, %v952
        %v954 = vrot.slane %v950, %v953
        %s956 = sor.u32 256, 4
        %957 = vbcast.lane.b32.xlu0 %v954, %s956
        %v958 = vpop.permute.xlu0 %957
        %s960 = sor.u32 256, 12
        %961 = vbcast.lane.b32.xlu0 %v954, %s960
        %v962 = vpop.permute.xlu0 %961
        %v963 = vlaneseq
        %v964 = vshrl.u32 %v963, 7
        %v965 = vsub.s32 1, %v964
        %v966 = vrot.slane %v950, %v965
        %s968 = sor.u32 256, 4
        %969 = vbcast.lane.b32.xlu0 %v966, %s968
        %v970 = vpop.permute.xlu0 %969
        %s972 = sor.u32 256, 12
        %973 = vbcast.lane.b32.xlu0 %v966, %s972
        %v974 = vpop.permute.xlu0 %973
        %v975 = vlaneseq
        %v976 = vshrl.u32 %v975, 7
        %v977 = vsub.s32 2, %v976
        %v978 = vrot.slane %v950, %v977
        %s980 = sor.u32 256, 4
        %981 = vbcast.lane.b32.xlu0 %v978, %s980
        %v982 = vpop.permute.xlu0 %981
        %s984 = sor.u32 256, 12
        %985 = vbcast.lane.b32.xlu0 %v978, %s984
        %v986 = vpop.permute.xlu0 %985
        %v987 = vlaneseq
        %v988 = vshrl.u32 %v987, 7
        %v989 = vsub.s32 3, %v988
        %v990 = vrot.slane %v950, %v989
        %s992 = sor.u32 256, 4
        %993 = vbcast.lane.b32.xlu0 %v990, %s992
        %v994 = vpop.permute.xlu0 %993
        %s996 = sor.u32 256, 12
        %997 = vbcast.lane.b32.xlu0 %v990, %s996
        %v998 = vpop.permute.xlu0 %997
        %v999 = vlaneseq
        %v1000 = vshrl.u32 %v999, 7
        %v1001 = vsub.s32 4, %v1000
        %v1002 = vrot.slane %v950, %v1001
        %s1004 = sor.u32 256, 4
        %1005 = vbcast.lane.b32.xlu0 %v1002, %s1004
        %v1006 = vpop.permute.xlu0 %1005
        %s1008 = sor.u32 256, 12
        %1009 = vbcast.lane.b32.xlu0 %v1002, %s1008
        %v1010 = vpop.permute.xlu0 %1009
        %v1011 = vlaneseq
        %v1012 = vshrl.u32 %v1011, 7
        %v1013 = vsub.s32 5, %v1012
        %v1014 = vrot.slane %v950, %v1013
        %s1016 = sor.u32 256, 4
        %1017 = vbcast.lane.b32.xlu0 %v1014, %s1016
        %v1018 = vpop.permute.xlu0 %1017
        %s1020 = sor.u32 256, 12
        %1021 = vbcast.lane.b32.xlu0 %v1014, %s1020
        %v1022 = vpop.permute.xlu0 %1021
        %v1023 = vlaneseq
        %v1024 = vshrl.u32 %v1023, 7
        %v1025 = vsub.s32 6, %v1024
        %v1026 = vrot.slane %v950, %v1025
        %s1028 = sor.u32 256, 4
        %1029 = vbcast.lane.b32.xlu0 %v1026, %s1028
        %v1030 = vpop.permute.xlu0 %1029
        %s1032 = sor.u32 256, 12
        %1033 = vbcast.lane.b32.xlu0 %v1026, %s1032
        %v1034 = vpop.permute.xlu0 %1033
        %v1035 = vlaneseq
        %v1036 = vshrl.u32 %v1035, 7
        %v1037 = vsub.s32 7, %v1036
        %v1038 = vrot.slane %v950, %v1037
        %s1040 = sor.u32 256, 4
        %1041 = vbcast.lane.b32.xlu0 %v1038, %s1040
        %v1042 = vpop.permute.xlu0 %1041
        %s1044 = sor.u32 256, 12
        %1045 = vbcast.lane.b32.xlu0 %v1038, %s1044
        %v1046 = vpop.permute.xlu0 %1045
        %vm1047 = vcmp.eq.s32.totalorder %v958, %v314
        %vm1048 = vcmp.eq.s32.totalorder %v962, %v314
        %vm1049 = vcmp.eq.s32.totalorder %v970, %v314
        %vm1050 = vcmp.eq.s32.totalorder %v974, %v314
        %vm1051 = vcmp.eq.s32.totalorder %v982, %v314
        %vm1052 = vcmp.eq.s32.totalorder %v986, %v314
        %vm1053 = vcmp.eq.s32.totalorder %v994, %v314
        %vm1054 = vcmp.eq.s32.totalorder %v998, %v314
        %vm1055 = vcmp.eq.s32.totalorder %v1006, %v314
        %vm1056 = vcmp.eq.s32.totalorder %v1010, %v314
        %vm1057 = vcmp.eq.s32.totalorder %v1018, %v314
        %vm1058 = vcmp.eq.s32.totalorder %v1022, %v314
        %vm1059 = vcmp.eq.s32.totalorder %v1030, %v314
        %vm1060 = vcmp.eq.s32.totalorder %v1034, %v314
        %vm1061 = vcmp.eq.s32.totalorder %v1042, %v314
        %vm1062 = vcmp.eq.s32.totalorder %v1046, %v314
        %v1063 = vsel %vm1047, 1, 0
        %v1064 = vsel %vm1048, 1, 0
        %v1065 = vsel %vm1049, 1, 0
        %v1066 = vsel %vm1050, 1, 0
        %v1067 = vsel %vm1051, 1, 0
        %v1068 = vsel %vm1052, 1, 0
        %v1069 = vsel %vm1053, 1, 0
        %v1070 = vsel %vm1054, 1, 0
        %v1071 = vsel %vm1055, 1, 0
        %v1072 = vsel %vm1056, 1, 0
        %v1073 = vsel %vm1057, 1, 0
        %v1074 = vsel %vm1058, 1, 0
        %v1075 = vsel %vm1059, 1, 0
        %v1076 = vsel %vm1060, 1, 0
        %v1077 = vsel %vm1061, 1, 0
        %v1078 = vsel %vm1062, 1, 0
        %v1079 = vcvt.s32.f32 %v1063
        %v1080 = vcvt.s32.f32 %v1064
        %v1081 = vcvt.s32.f32 %v1065
        %v1082 = vcvt.s32.f32 %v1066
        %v1083 = vcvt.s32.f32 %v1067
        %v1084 = vcvt.s32.f32 %v1068
        %v1085 = vcvt.s32.f32 %v1069
        %v1086 = vcvt.s32.f32 %v1070
        %v1087 = vcvt.s32.f32 %v1071
        %v1088 = vcvt.s32.f32 %v1072
        %v1089 = vcvt.s32.f32 %v1073
        %v1090 = vcvt.s32.f32 %v1074
        %v1091 = vcvt.s32.f32 %v1075
        %v1092 = vcvt.s32.f32 %v1076
        %v1093 = vcvt.s32.f32 %v1077
        %v1094 = vcvt.s32.f32 %v1078
        %v1095 = vpack.c.bf16 %v1080, %v1079
        %v1096 = vpack.c.bf16 %v1082, %v1081
        %v1097 = vpack.c.bf16 %v1084, %v1083
        %v1098 = vpack.c.bf16 %v1086, %v1085
        %v1099 = vpack.c.bf16 %v1088, %v1087
        %v1100 = vpack.c.bf16 %v1090, %v1089
        %v1101 = vpack.c.bf16 %v1092, %v1091
        %v1102 = vpack.c.bf16 %v1094, %v1093
        %v1103 = vadd.bf16 %v942, %v1095
        %v1104 = vadd.bf16 %v943, %v1096
        %v1105 = vadd.bf16 %v944, %v1097
        %v1106 = vadd.bf16 %v945, %v1098
        %v1107 = vadd.bf16 %v946, %v1099
        %v1108 = vadd.bf16 %v947, %v1100
        %v1109 = vadd.bf16 %v948, %v1101
        %v1110 = vadd.bf16 %v949, %v1102
        %v1111 = vld [vmem:[#allocation5] sm:$0xf]
        %v1112 = vld [vmem:[#allocation5 + $0x4] sm:$0xf]
        %v1113 = vld [vmem:[#allocation5 + $0x8] sm:$0xf]
        %v1114 = vld [vmem:[#allocation5 + $0xc] sm:$0xf]
        %v1115 = vld [vmem:[#allocation5 + $0x10] sm:$0xf]
        %v1116 = vld [vmem:[#allocation5 + $0x14] sm:$0xf]
        %v1117 = vld [vmem:[#allocation5 + $0x18] sm:$0xf]
        %v1118 = vld [vmem:[#allocation5 + $0x1c] sm:$0xf]
        %v1119 = vld [vmem:[#allocation5 + $0x20] sm:$0xf]
        %v1120 = vld [vmem:[#allocation5 + $0x24] sm:$0xf]
        %v1121 = vld [vmem:[#allocation5 + $0x28] sm:$0xf]
        %v1122 = vld [vmem:[#allocation5 + $0x2c] sm:$0xf]
        %v1123 = vld [vmem:[#allocation5 + $0x30] sm:$0xf]
        %v1124 = vld [vmem:[#allocation5 + $0x34] sm:$0xf]
        %v1125 = vld [vmem:[#allocation5 + $0x38] sm:$0xf]
        %v1126 = vld [vmem:[#allocation5 + $0x3c] sm:$0xf]
        %v1143 = vunpack.c.l.b16 %v1111
        %v1144 = vunpack.c.l.b16 %v1112
        %v1145 = vunpack.c.l.b16 %v1113
        %v1146 = vunpack.c.l.b16 %v1114
        %v1147 = vunpack.c.l.b16 %v1115
        %v1148 = vunpack.c.l.b16 %v1116
        %v1149 = vunpack.c.l.b16 %v1117
        %v1150 = vunpack.c.l.b16 %v1118
        %v1151 = vunpack.c.l.b16 %v1119
        %v1152 = vunpack.c.l.b16 %v1120
        %v1153 = vunpack.c.l.b16 %v1121
        %v1154 = vunpack.c.l.b16 %v1122
        %v1155 = vunpack.c.l.b16 %v1123
        %v1156 = vunpack.c.l.b16 %v1124
        %v1157 = vunpack.c.l.b16 %v1125
        %v1158 = vunpack.c.l.b16 %v1126
        %v1159 = vpack.c.b16 %v1144, %v1143
        %v1160 = vpack.c.b16 %v1146, %v1145
        %v1161 = vpack.c.b16 %v1148, %v1147
        %v1162 = vpack.c.b16 %v1150, %v1149
        %v1163 = vpack.c.b16 %v1152, %v1151
        %v1164 = vpack.c.b16 %v1154, %v1153
        %v1165 = vpack.c.b16 %v1156, %v1155
        %v1166 = vpack.c.b16 %v1158, %v1157
        %1175 = vmatprep.subr.bf16.mxu0 0
        %1176 = vmatpush1.bf16.msra.mxu0 %v1159
        %1177 = vmatprep.subr.bf16.mxu0 0
        %1178 = vmatpush1.bf16.msra.mxu0 %v1160
        %1179 = vmatprep.subr.bf16.mxu0 0
        %1180 = vmatpush1.bf16.msra.mxu0 %v1161
        %1181 = vmatprep.subr.bf16.mxu0 0
        %1182 = vmatpush1.bf16.msra.mxu0 %v1162
        %1183 = vmatprep.subr.bf16.mxu0 0
        %1184 = vmatpush1.bf16.msra.mxu0 %v1163
        %1185 = vmatprep.subr.bf16.mxu0 0
        %1186 = vmatpush1.bf16.msra.mxu0 %v1164
        %1187 = vmatprep.subr.bf16.mxu0 0
        %1188 = vmatpush1.bf16.msra.mxu0 %v1165
        %1189 = vmatprep.subr.bf16.mxu0 0
        %1190 = vmatpush1.bf16.msra.mxu0 %v1166
        %1191 = vmatprep.subr.bf16.mxu0 0
        %1192 = vmatpush1.bf16.msra.mxu0 0
        %1193 = vmatprep.subr.bf16.mxu0 0
        %1194 = vmatpush1.bf16.msra.mxu0 0
        %1195 = vmatprep.subr.bf16.mxu0 0
        %1196 = vmatpush1.bf16.msra.mxu0 0
        %1197 = vmatprep.subr.bf16.mxu0 0
        %1198 = vmatpush1.bf16.msra.mxu0 0
        %1199 = vmatprep.subr.bf16.mxu0 0
        %1200 = vmatpush1.bf16.msra.mxu0 0
        %1201 = vmatprep.subr.bf16.mxu0 0
        %1202 = vmatpush1.bf16.msra.mxu0 0
        %1203 = vmatprep.subr.bf16.mxu0 0
        %1204 = vmatpush1.bf16.msra.mxu0 0
        %1205 = vmatprep.subr.bf16.mxu0 0
        %1206 = vmatpush1.bf16.msra.mxu0 0
        %1207 = vmatprep.mubr.bf16.mxu0 0
        %1208 = vmatmul.mubr.bf16.gmra.mrb[0].mxu0 %v1103
        %v1209 = vpop.f32.mrb[0].mxu0
        %v1210 = vadd.f32 0.0, %v1209
        %v1211 = vpop.f32.mrb[0].mxu0
        %v1212 = vpop.f32.mrb[0].mxu0
        %v1213 = vadd.f32 0.0, %v1212
        %v1214 = vpop.f32.mrb[0].mxu0
        %1215 = vmatprep.mubr.bf16.mxu0 0
        %1216 = vmatmul.mubr.bf16.gmra.mrb[0].mxu0 %v1104
        %v1217 = vpop.f32.mrb[0].mxu0
        %v1218 = vadd.f32 0.0, %v1217
        %v1219 = vpop.f32.mrb[0].mxu0
        %v1220 = vpop.f32.mrb[0].mxu0
        %v1221 = vadd.f32 0.0, %v1220
        %v1222 = vpop.f32.mrb[0].mxu0
        %1223 = vmatprep.mubr.bf16.mxu0 0
        %1224 = vmatmul.mubr.bf16.gmra.mrb[0].mxu0 %v1105
        %v1225 = vpop.f32.mrb[0].mxu0
        %v1226 = vadd.f32 0.0, %v1225
        %v1227 = vpop.f32.mrb[0].mxu0
        %v1228 = vpop.f32.mrb[0].mxu0
        %v1229 = vadd.f32 0.0, %v1228
        %v1230 = vpop.f32.mrb[0].mxu0
        %1231 = vmatprep.mubr.bf16.mxu0 0
        %1232 = vmatmul.mubr.bf16.gmra.mrb[0].mxu0 %v1106
        %v1233 = vpop.f32.mrb[0].mxu0
        %v1234 = vadd.f32 0.0, %v1233
        %v1235 = vpop.f32.mrb[0].mxu0
        %v1236 = vpop.f32.mrb[0].mxu0
        %v1237 = vadd.f32 0.0, %v1236
        %v1238 = vpop.f32.mrb[0].mxu0
        %1239 = vmatprep.mubr.bf16.mxu0 0
        %1240 = vmatmul.mubr.bf16.gmra.mrb[0].mxu0 %v1107
        %v1241 = vpop.f32.mrb[0].mxu0
        %v1242 = vadd.f32 0.0, %v1241
        %v1243 = vpop.f32.mrb[0].mxu0
        %v1244 = vpop.f32.mrb[0].mxu0
        %v1245 = vadd.f32 0.0, %v1244
        %v1246 = vpop.f32.mrb[0].mxu0
        %1247 = vmatprep.mubr.bf16.mxu0 0
        %1248 = vmatmul.mubr.bf16.gmra.mrb[0].mxu0 %v1108
        %v1249 = vpop.f32.mrb[0].mxu0
        %v1250 = vadd.f32 0.0, %v1249
        %v1251 = vpop.f32.mrb[0].mxu0
        %v1252 = vpop.f32.mrb[0].mxu0
        %v1253 = vadd.f32 0.0, %v1252
        %v1254 = vpop.f32.mrb[0].mxu0
        %1255 = vmatprep.mubr.bf16.mxu0 0
        %1256 = vmatmul.mubr.bf16.gmra.mrb[0].mxu0 %v1109
        %v1257 = vpop.f32.mrb[0].mxu0
        %v1258 = vadd.f32 0.0, %v1257
        %v1259 = vpop.f32.mrb[0].mxu0
        %v1260 = vpop.f32.mrb[0].mxu0
        %v1261 = vadd.f32 0.0, %v1260
        %v1262 = vpop.f32.mrb[0].mxu0
        %1263 = vmatprep.mubr.bf16.mxu0 0
        %1264 = vmatmul.mubr.bf16.gmra.mrb[0].mxu0 %v1110
        %v1265 = vpop.f32.mrb[0].mxu0
        %v1266 = vadd.f32 0.0, %v1265
        %v1267 = vpop.f32.mrb[0].mxu0
        %v1268 = vpop.f32.mrb[0].mxu0
        %v1269 = vadd.f32 0.0, %v1268
        %v1270 = vpop.f32.mrb[0].mxu0
        %1271 = vdwg.mxu0
        %v1272 = vld [vmem:[#allocation7] sm:$0xff]
        %v1273 = vld [vmem:[#allocation7 + $0x8] sm:$0xff]
        %v1274 = vadd.f32 %v1210, %v1272
        %v1275 = vadd.f32 %v1213, %v1273
        %v1276 = vadd.f32 %v1218, %v1272
        %v1277 = vadd.f32 %v1221, %v1273
        %v1278 = vadd.f32 %v1226, %v1272
        %v1279 = vadd.f32 %v1229, %v1273
        %v1280 = vadd.f32 %v1234, %v1272
        %v1281 = vadd.f32 %v1237, %v1273
        %v1282 = vadd.f32 %v1242, %v1272
        %v1283 = vadd.f32 %v1245, %v1273
        %v1284 = vadd.f32 %v1250, %v1272
        %v1285 = vadd.f32 %v1253, %v1273
        %v1286 = vadd.f32 %v1258, %v1272
        %v1287 = vadd.f32 %v1261, %v1273
        %v1288 = vadd.f32 %v1266, %v1272
        %v1289 = vadd.f32 %v1269, %v1273
        %v1290 = vmax.f32 %v1274, %v1275
        %v1291 = vrot.slane %v1290, 4
        %v1292 = vmax.f32 %v1290, %v1291
        %v1293 = vrot.slane %v1292, 2
        %v1294 = vmax.f32 %v1292, %v1293
        %v1295 = vrot.slane %v1294, 1
        %v1296 = vmax.f32 %v1294, %v1295
        %v1297 = vmax.f32 %v1276, %v1277
        %v1298 = vrot.slane %v1297, 4
        %v1299 = vmax.f32 %v1297, %v1298
        %v1300 = vrot.slane %v1299, 2
        %v1301 = vmax.f32 %v1299, %v1300
        %v1302 = vrot.slane %v1301, 1
        %v1303 = vmax.f32 %v1301, %v1302
        %v1304 = vmax.f32 %v1278, %v1279
        %v1305 = vrot.slane %v1304, 4
        %v1306 = vmax.f32 %v1304, %v1305
        %v1307 = vrot.slane %v1306, 2
        %v1308 = vmax.f32 %v1306, %v1307
        %v1309 = vrot.slane %v1308, 1
        %v1310 = vmax.f32 %v1308, %v1309
        %v1311 = vmax.f32 %v1280, %v1281
        %v1312 = vrot.slane %v1311, 4
        %v1313 = vmax.f32 %v1311, %v1312
        %v1314 = vrot.slane %v1313, 2
        %v1315 = vmax.f32 %v1313, %v1314
        %v1316 = vrot.slane %v1315, 1
        %v1317 = vmax.f32 %v1315, %v1316
        %v1318 = vmax.f32 %v1282, %v1283
        %v1319 = vrot.slane %v1318, 4
        %v1320 = vmax.f32 %v1318, %v1319
        %v1321 = vrot.slane %v1320, 2
        %v1322 = vmax.f32 %v1320, %v1321
        %v1323 = vrot.slane %v1322, 1
        %v1324 = vmax.f32 %v1322, %v1323
        %v1325 = vmax.f32 %v1284, %v1285
        %v1326 = vrot.slane %v1325, 4
        %v1327 = vmax.f32 %v1325, %v1326
        %v1328 = vrot.slane %v1327, 2
        %v1329 = vmax.f32 %v1327, %v1328
        %v1330 = vrot.slane %v1329, 1
        %v1331 = vmax.f32 %v1329, %v1330
        %v1332 = vmax.f32 %v1286, %v1287
        %v1333 = vrot.slane %v1332, 4
        %v1334 = vmax.f32 %v1332, %v1333
        %v1335 = vrot.slane %v1334, 2
        %v1336 = vmax.f32 %v1334, %v1335
        %v1337 = vrot.slane %v1336, 1
        %v1338 = vmax.f32 %v1336, %v1337
        %v1339 = vmax.f32 %v1288, %v1289
        %v1340 = vrot.slane %v1339, 4
        %v1341 = vmax.f32 %v1339, %v1340
        %v1342 = vrot.slane %v1341, 2
        %v1343 = vmax.f32 %v1341, %v1342
        %v1344 = vrot.slane %v1343, 1
        %v1345 = vmax.f32 %v1343, %v1344
        %v1346 = vld [vmem:[%s3] sm:$0x1]
        %v1348 = vlaneseq
        %v1349 = vshrl.u32 %v1348, 7
        %v1350 = vsub.s32 0, %v1349
        %v1351 = vrot.slane %v1346, %v1350
        %v1353 = vadd.f32 %v1296, %v1351
        %v1354 = vadd.f32 %v1303, %v1351
        %v1355 = vadd.f32 %v1310, %v1351
        %v1356 = vadd.f32 %v1317, %v1351
        %v1357 = vadd.f32 %v1324, %v1351
        %v1358 = vadd.f32 %v1331, %v1351
        %v1359 = vadd.f32 %v1338, %v1351
        %v1360 = vadd.f32 %v1345, %v1351
        %v1361 = vmax.f32 %v1353, 0.0
        %v1362 = vmax.f32 %v1354, 0.0
        %v1363 = vmax.f32 %v1355, 0.0
        %v1364 = vmax.f32 %v1356, 0.0
        %v1365 = vmax.f32 %v1357, 0.0
        %v1366 = vmax.f32 %v1358, 0.0
        %v1367 = vmax.f32 %v1359, 0.0
        %v1368 = vmax.f32 %v1360, 0.0
        %v1369 = vpack.c.bf16 %v1361, %v1361
        %v1370 = vpack.c.bf16 %v1362, %v1362
        %v1371 = vpack.c.bf16 %v1363, %v1363
        %v1372 = vpack.c.bf16 %v1364, %v1364
        %v1373 = vpack.c.bf16 %v1365, %v1365
        %v1374 = vpack.c.bf16 %v1366, %v1366
        %v1375 = vpack.c.bf16 %v1367, %v1367
        %v1376 = vpack.c.bf16 %v1368, %v1368
        %v1377 = vld [vmem:[#allocation8] sm:$0xf]
        %v1378 = vld [vmem:[#allocation8 + $0x4] sm:$0xf]
        %v1379 = vld [vmem:[#allocation8 + $0x8] sm:$0xf]
        %v1380 = vld [vmem:[#allocation8 + $0xc] sm:$0xf]
        %v1381 = vld [vmem:[#allocation8 + $0x10] sm:$0xf]
        %v1382 = vld [vmem:[#allocation8 + $0x14] sm:$0xf]
        %v1383 = vld [vmem:[#allocation8 + $0x18] sm:$0xf]
        %v1384 = vld [vmem:[#allocation8 + $0x1c] sm:$0xf]
        %v1385 = vld [vmem:[#allocation8 + $0x20] sm:$0xf]
        %v1386 = vld [vmem:[#allocation8 + $0x24] sm:$0xf]
        %v1387 = vld [vmem:[#allocation8 + $0x28] sm:$0xf]
        %v1388 = vld [vmem:[#allocation8 + $0x2c] sm:$0xf]
        %v1389 = vld [vmem:[#allocation8 + $0x30] sm:$0xf]
        %v1390 = vld [vmem:[#allocation8 + $0x34] sm:$0xf]
        %v1391 = vld [vmem:[#allocation8 + $0x38] sm:$0xf]
        %v1392 = vld [vmem:[#allocation8 + $0x3c] sm:$0xf]
        %v1393 = vld [vmem:[%s5] sm:$0x1]
        %v1395 = vlaneseq
        %v1396 = vshrl.u32 %v1395, 7
        %v1397 = vsub.s32 0, %v1396
        %v1398 = vrot.slane %v1393, %v1397
        %v1408 = vunpack.c.l.b16 %v1369
        %v1409 = vunpack.c.l.b16 %v1370
        %v1410 = vunpack.c.l.b16 %v1371
        %v1411 = vunpack.c.l.b16 %v1372
        %v1412 = vunpack.c.l.b16 %v1373
        %v1413 = vunpack.c.l.b16 %v1374
        %v1414 = vunpack.c.l.b16 %v1375
        %v1415 = vunpack.c.l.b16 %v1376
        %v1416 = vrot.slane %v1409, 7
        %vm1417 = vcmask 1041409
        %v1418 = vsel %vm1417, %v1416, %v1408
        %v1419 = vrot.slane %v1410, 6
        %vm1420 = vcmask 1042434
        %v1421 = vsel %vm1420, %v1419, %v1418
        %v1422 = vrot.slane %v1411, 5
        %vm1423 = vcmask 1043459
        %v1424 = vsel %vm1423, %v1422, %v1421
        %v1425 = vrot.slane %v1412, 4
        %vm1426 = vcmask 1044484
        %v1427 = vsel %vm1426, %v1425, %v1424
        %v1428 = vrot.slane %v1413, 3
        %vm1429 = vcmask 1045509
        %v1430 = vsel %vm1429, %v1428, %v1427
        %v1431 = vrot.slane %v1414, 2
        %vm1432 = vcmask 1046534
        %v1433 = vsel %vm1432, %v1431, %v1430
        %v1434 = vrot.slane %v1415, 1
        %vm1435 = vcmask 1047559
        %v1436 = vsel %vm1435, %v1434, %v1433
        %v1437 = vpack.c.b16 %v1436, %v1436
        %v1455 = vunpack.c.l.b16 %v1377
        %v1456 = vunpack.c.l.b16 %v1378
        %v1457 = vunpack.c.l.b16 %v1379
        %v1458 = vunpack.c.l.b16 %v1380
        %v1459 = vunpack.c.l.b16 %v1381
        %v1460 = vunpack.c.l.b16 %v1382
        %v1461 = vunpack.c.l.b16 %v1383
        %v1462 = vunpack.c.l.b16 %v1384
        %v1463 = vunpack.c.l.b16 %v1385
        %v1464 = vunpack.c.l.b16 %v1386
        %v1465 = vunpack.c.l.b16 %v1387
        %v1466 = vunpack.c.l.b16 %v1388
        %v1467 = vunpack.c.l.b16 %v1389
        %v1468 = vunpack.c.l.b16 %v1390
        %v1469 = vunpack.c.l.b16 %v1391
        %v1470 = vunpack.c.l.b16 %v1392
        %v1471 = vpack.c.b16 %v1456, %v1455
        %v1472 = vpack.c.b16 %v1458, %v1457
        %v1473 = vpack.c.b16 %v1460, %v1459
        %v1474 = vpack.c.b16 %v1462, %v1461
        %v1475 = vpack.c.b16 %v1464, %v1463
        %v1476 = vpack.c.b16 %v1466, %v1465
        %v1477 = vpack.c.b16 %v1468, %v1467
        %v1478 = vpack.c.b16 %v1470, %v1469
        %1487 = vmatprep.subr.bf16.mxu0 0
        %1488 = vmatpush1.bf16.msra.mxu0 %v1471
        %1489 = vmatprep.subr.bf16.mxu0 0
        %1490 = vmatpush1.bf16.msra.mxu0 %v1472
        %1491 = vmatprep.subr.bf16.mxu0 0
        %1492 = vmatpush1.bf16.msra.mxu0 %v1473
        %1493 = vmatprep.subr.bf16.mxu0 0
        %1494 = vmatpush1.bf16.msra.mxu0 %v1474
        %1495 = vmatprep.subr.bf16.mxu0 0
        %1496 = vmatpush1.bf16.msra.mxu0 %v1475
        %1497 = vmatprep.subr.bf16.mxu0 0
        %1498 = vmatpush1.bf16.msra.mxu0 %v1476
        %1499 = vmatprep.subr.bf16.mxu0 0
        %1500 = vmatpush1.bf16.msra.mxu0 %v1477
        %1501 = vmatprep.subr.bf16.mxu0 0
        %1502 = vmatpush1.bf16.msra.mxu0 %v1478
        %1503 = vmatprep.subr.bf16.mxu0 0
        %1504 = vmatpush1.bf16.msra.mxu0 0
        %1505 = vmatprep.subr.bf16.mxu0 0
        %1506 = vmatpush1.bf16.msra.mxu0 0
        %1507 = vmatprep.subr.bf16.mxu0 0
        %1508 = vmatpush1.bf16.msra.mxu0 0
        %1509 = vmatprep.subr.bf16.mxu0 0
        %1510 = vmatpush1.bf16.msra.mxu0 0
        %1511 = vmatprep.subr.bf16.mxu0 0
        %1512 = vmatpush1.bf16.msra.mxu0 0
        %1513 = vmatprep.subr.bf16.mxu0 0
        %1514 = vmatpush1.bf16.msra.mxu0 0
        %1515 = vmatprep.subr.bf16.mxu0 0
        %1516 = vmatpush1.bf16.msra.mxu0 0
        %1517 = vmatprep.subr.bf16.mxu0 0
        %1518 = vmatpush1.bf16.msra.mxu0 0
        %1519 = vmatprep.mubr.bf16.mxu0 0
        %1520 = vmatmul.mubr.bf16.gmra.mrb[0].mxu0 %v1437
        %v1521 = vpop.f32.mrb[0].mxu0
        %v1522 = vadd.f32 %v1398, %v1521
        %v1523 = vpop.f32.mrb[0].mxu0
        %v1524 = vpop.f32.mrb[0].mxu0
        %v1525 = vpop.f32.mrb[0].mxu0
        %1526 = vdwg.mxu0
        %1527 = vst [vmem:[%s310] sm:$0xff] %v1522
        %s1528 = sand.u32 %s164, 1
        %s1529 = scalar_lea.sflag [#allocation4], %s1528
        %s1530 = sand.u32 %s164, 1
        %s1531 = smul.addr %s1530, 8
        %s1532 = scalar_lea.vmem [#allocation10], %s1531
        // Predicated region
        $region61: #{tpu_custom_call.1} parent=43 // pred_check
          %p1533 = pneg %p174
        $region62: #{tpu_custom_call.1} parent=43 // pred_check_branch
          %1535 = sbr.rel (%p1533) target = $region64
        $region63: #{tpu_custom_call.1} parent=43 // pred_region
          %s1537 = ssub.s32 128, 128
          %1538 = vsyncadd %s1529, %s1537
          %s1539 = smul.addr %s25, 128
          %s1540 = scalar_lea.hbm %s6, %s1539
          %s1542 = sshll.u32 %s1532, 4
          %s1543 = int_to_ptr.vmem [resolvable:$true] %s1542
          %1545 = dma.vmem_to_hbm [thread:$0]  %s1543, 128, %s1540, %s1529
        $region64: #{tpu_custom_call.1} parent=43 // pred_fallthru
          _
      $region44: #{tpu_custom_call.1} parent=5 // pred_fallthru
        _
      %p1546 = scmp.le.s32.totalorder 2, %s20
      // Predicated region
      $region65: #{tpu_custom_call.1} parent=5 // pred_check
        %p1547 = pneg %p1546
      $region66: #{tpu_custom_call.1} parent=5 // pred_check_branch
        %1549 = sbr.rel (%p1547) target = $region68
      $region67: #{tpu_custom_call.1} parent=5 // pred_region
        %s1550 = ssub.s32 %s20, 2
        // Predicated region
        $region69: #{tpu_custom_call.1} parent=67 // pred_check
          %p1551 = pneg %p180
        $region70: #{tpu_custom_call.1} parent=67 // pred_check_branch
          %1553 = sbr.rel (%p1551) target = $region72
        $region71: #{tpu_custom_call.1} parent=67 // pred_region
          %s1554 = sand.u32 %s165, 1
          %s1555 = scalar_lea.sflag [#allocation4], %s1554
          %s1556 = sand.u32 %s165, 1
          %s1557 = smul.addr %s1556, 8
          %s1558 = scalar_lea.vmem [#allocation10], %s1557
          %1559 = dma.done %s1555, 128
        $region72: #{tpu_custom_call.1} parent=67 // pred_fallthru
          _
      $region68: #{tpu_custom_call.1} parent=5 // pred_fallthru
        _
    $region6: #{tpu_custom_call.1} parent=1 // loop_footer
      %s24 = sadd.s32 1, %s20
    $region7: #{tpu_custom_call.1} parent=1 // loop_footer_branch
      %19 = sbr.rel target = $region3
    $region8: #{tpu_custom_call.1} parent=1 // loop_exit
      _
    %1560 = vsyncpa [#allocation3], 1
    %s1561 = scalar_lea.sflag [#allocation3], 1
    %1562 = vsyncpa %s1561, 1
    %1563 = vsyncpa [#allocation6], 1
    %1564 = vsyncpa [#allocation9], 1
    %1565 = vsyncpa [#allocation4], 1
    %s1566 = scalar_lea.sflag [#allocation4], 1
    %1567 = vsyncpa %s1566, 1

</llo_original>
